<compile_context>
chip_gen: v6e
topology: v6e:2x2x1
jax: 0.10.0
libtpu: 0.0.40
codegen_flags: <defaults>
</compile_context>

<pallas_src>
import functools
import math

import jax
import jax.numpy as jnp
from jax import lax
from jax.experimental import pallas as pl
from jax.experimental.pallas import tpu as pltpu


def _round_up(x, m):
    return ((x + m - 1) // m) * m


def _supcon_tile_kernel(anchor_ref, contrast_ref, mask_ref,
                        denom_ref, posnum_ref, poscache, negcache,
                        *, inv_t, m_valid, m_padded):
    i = pl.program_id(0)   # anchor-row block            ("parallel")
    j = pl.program_id(1)   # contrast-col block in group ("arbitrary")
    c = pl.program_id(2)   # contrast group / view index ("arbitrary", innermost)

    tm, tn = poscache.shape

    @pl.when((j == 0) & (c == 0))
    def _init():
        denom_ref[...] = jnp.zeros_like(denom_ref)
        posnum_ref[...] = jnp.zeros_like(posnum_ref)

    # Logits tile on the MXU (bf16 in, f32 acc).  Inputs are pre-normalized so
    # cos <= 1; shift by the constant 1/temperature instead of the per-row max.
    shifted = jnp.dot(anchor_ref[...], contrast_ref[...],
                      preferred_element_type=jnp.float32) * inv_t - inv_t
    es = jnp.exp(shifted)                                       # (tm, tn) f32, EUP

    def _accumulate(pos, neg):
        # Lane-partial accumulation: VPU adds of lane-aligned 128-wide slices;
        # the single cross-lane reduce happens in the wrapper on the output.
        e = es * neg
        pe = shifted * pos
        dpart = e[:, 0:128]
        ppart = pe[:, 0:128]
        for s in range(1, tn // 128):                            # static unroll
            lo, hi = s * 128, (s + 1) * 128
            dpart = dpart + e[:, lo:hi]
            ppart = ppart + pe[:, lo:hi]
        denom_ref[...] += dpart
        posnum_ref[...] += ppart

    @pl.when(c == 0)
    def _first_group():
        # Build mask tiles once per (i, j); cache the c > 0 variants in VMEM.
        mt = mask_ref[...].astype(jnp.float32)                   # positives (0/1)
        row_g = i * tm + lax.broadcasted_iota(jnp.int32, (tm, tn), 0)
        col_g = j * tn + lax.broadcasted_iota(jnp.int32, (tm, tn), 1)
        if m_valid < m_padded:                                   # static
            valid = (col_g < m_valid).astype(jnp.float32)        # drop padded cols
            neg = valid * (1.0 - mt)
        else:
            neg = 1.0 - mt
        poscache[...] = mt                                       # padded cols are 0
        negcache[...] = neg
        # TODO(synk): assumes arange_mat == arange(M).view(-1, 1) (standard SupCon
        # self-exclusion scatter); arbitrary scatter index patterns not supported.
        nd = (row_g != col_g).astype(jnp.float32)                # drop self, group 0
        _accumulate(mt * nd, neg * nd)

    @pl.when(c != 0)
    def _other_groups():
        _accumulate(poscache[...], negcache[...])


def contrastive_approximater_forward(agent_traj, emb_messages, mask, arange_mat=None,
                                     *, temperature=0.07, base_temperature=0.07,
                                     block_m=512, block_n=512):
    """JAX/Pallas equivalent of ContrastiveApproximater.forward.

    agent_traj: (B, T, A, H), emb_messages: (B, T, A, N, H),
    mask: (M, M) with M = B*T*A, arange_mat: (M, 1) (assumed arange(M)).
    block_m / block_n must be multiples of 128.  Returns scalar f32 loss.
    """
    B, T, A, N, H = emb_messages.shape
    C = N + 1
    M = B * T * A

    # ---- _data_proc + F.normalize, once, in f32 -------------------------------
    # TODO(synk): assumes args.norm_type selects the hidden (last) dim.
    views = jnp.concatenate(
        [agent_traj.reshape(B, T, A, 1, H), emb_messages], axis=3
    ).reshape(M, C, H).astype(jnp.float32)
    views = views / jnp.maximum(
        jnp.sqrt(jnp.sum(views * views, axis=-1, keepdims=True)), 1e-12)

    # ---- tiling: lane-dense tiles; pad M so the tiles divide it evenly --------
    assert block_m % 128 == 0 and block_n % 128 == 0
    tm = min(block_m, _round_up(M, 128))
    tn = min(block_n, _round_up(M, 128))
    Mp = _round_up(M, math.lcm(tm, tn))
    pad = Mp - M
    gi, gj = Mp // tm, Mp // tn

    views_p = jnp.pad(views, ((0, pad), (0, 0), (0, 0))) if pad else views

    # bf16 features for the MXU (normalization already done in f32).
    anchor = views_p[:, 0, :].astype(jnp.bfloat16)                     # (Mp, H)
    # Contrast laid out H-major: contrast_t[:, c*Mp + m] == views[m, c, :]
    # (== torch.cat(torch.unbind(views, 1), 0).T), so jnp.dot needs no transpose.
    contrast_t = jnp.transpose(views_p.astype(jnp.bfloat16), (2, 1, 0)
                               ).reshape(H, C * Mp)

    mask32 = mask.astype(jnp.float32)                                  # (M, M)
    mask_bf = mask32.astype(jnp.bfloat16)                              # binary -> exact
    if pad:
        mask_bf = jnp.pad(mask_bf, ((0, pad), (0, pad)))

    kernel = functools.partial(_supcon_tile_kernel,
                               inv_t=1.0 / float(temperature),
                               m_valid=M, m_padded=Mp)

    grid_spec = pltpu.PrefetchScalarGridSpec(
        num_scalar_prefetch=0,
        grid=(gi, gj, C),
        in_specs=[
            # anchor rows: resident across the whole (j, c) reduction
            pl.BlockSpec((tm, H), lambda i, j, c: (i, 0)),
            # contrast columns of group c, block j (streamed every step)
            pl.BlockSpec((H, tn), lambda i, j, c: (0, c * gj + j)),
            # (Mp, Mp) mask tile; c is innermost so the block is reused (no re-DMA)
            pl.BlockSpec((tm, tn), lambda i, j, c: (i, j)),
        ],
        out_specs=[
            # lane-partial accumulators, resident across (j, c), lane-dense stores
            pl.BlockSpec((tm, 128), lambda i, j, c: (i, 0)),
            pl.BlockSpec((tm, 128), lambda i, j, c: (i, 0)),
        ],
        scratch_shapes=[pltpu.VMEM((tm, tn), jnp.float32)] * 2,
    )

    denom_part, posnum_part = pl.pallas_call(
        kernel,
        out_shape=(jax.ShapeDtypeStruct((Mp, 128), jnp.float32),
                   jax.ShapeDtypeStruct((Mp, 128), jnp.float32)),
        grid_spec=grid_spec,
        compiler_params=pltpu.CompilerParams(
            dimension_semantics=("parallel", "arbitrary", "arbitrary"),
            vmem_limit_bytes=48 * 1024 * 1024),
    )(anchor, contrast_t, mask_bf)

    # ---- finalize: tiny O(M) math in the wrapper ------------------------------
    denom = jnp.sum(denom_part, axis=1)[:M]
    posnum = jnp.sum(posnum_part, axis=1)[:M]
    # npos precomputed here (instead of a third per-step in-kernel reduction):
    # mask_eff row-sum = C * rowsum(mask) - mask[i, i] (self excluded in group 0).
    npos = C * jnp.sum(mask32, axis=1) - jnp.diagonal(mask32)
    npos_c = jnp.where(npos < 1e-6, 1.0, npos)
    mean_lpp = (posnum - npos * jnp.log(denom)) / npos_c
    return jnp.mean(-(float(temperature) / float(base_temperature)) * mean_lpp)


def _reference_loss(agent_traj, emb_messages, mask, arange_mat,
                    temperature=0.07, base_temperature=0.07):
    """Pure-JAX f32 mirror of the PyTorch module (sanity check)."""
    B, T, A, N, H = emb_messages.shape
    M, C = B * T * A, N + 1
    views = jnp.concatenate(
        [agent_traj.reshape(B, T, A, 1, H), emb_messages], axis=3
    ).reshape(M, C, H).astype(jnp.float32)
    views = views / jnp.maximum(jnp.linalg.norm(views, axis=-1, keepdims=True), 1e-12)
    contrast = jnp.concatenate([views[:, c, :] for c in range(C)], axis=0)
    anchor = views[:, 0, :]
    adc = (anchor @ contrast.T) / temperature
    logits = adc - jnp.max(adc, axis=1, keepdims=True)
    mask_r = jnp.tile(mask.astype(jnp.float32), (1, C))
    lmask = jnp.ones_like(mask_r).at[jnp.arange(M)[:, None], arange_mat].set(0.0)
    mask_r = mask_r * lmask
    lmask = lmask * (1.0 - mask_r)
    exp_l = jnp.exp(logits) * lmask
    log_prob = logits - jnp.log(exp_l.sum(1, keepdims=True))
    npos = mask_r.sum(1)
    npos = jnp.where(npos < 1e-6, 1.0, npos)
    mlpp = (mask_r * log_prob).sum(1) / npos
    return jnp.mean(-(temperature / base_temperature) * mlpp)


if __name__ == "__main__":
    # Small deterministic example consistent with the module's shapes.
    B, T, A, N, H = 2, 2, 2, 3, 32          # -> M = 8 anchors, contrast_count = 4
    M = B * T * A

    key = jax.random.PRNGKey(0)
    k1, k2, k3 = jax.random.split(key, 3)
    agent_traj = jax.random.normal(k1, (B, T, A, H), dtype=jnp.float32)
    emb_messages = jax.random.normal(k2, (B, T, A, N, H), dtype=jnp.float32)

    # Positive-pair mask from synthetic labels (standard SupCon construction).
    labels = jax.random.randint(k3, (M,), 0, 3)
    mask = (labels[:, None] == labels[None, :]).astype(jnp.float32)   # (M, M)
    arange_mat = jnp.arange(M, dtype=jnp.int32).reshape(M, 1)         # (M, 1)

    loss = contrastive_approximater_forward(
        agent_traj, emb_messages, mask, arange_mat,
        temperature=0.07, base_temperature=0.07)
    loss = jax.block_until_ready(loss)

    ref = jax.block_until_ready(
        _reference_loss(agent_traj, emb_messages, mask, arange_mat, 0.07, 0.07))

    assert loss.shape == () and bool(jnp.isfinite(loss))
    # bf16 MXU inputs -> allow a generous tolerance vs. the f32 reference.
    assert abs(float(loss) - float(ref)) <= 0.08 * abs(float(ref)) + 5e-2, (
        float(loss), float(ref))
    print("KERNEL_OK")
</pallas_src>

<mosaic_0001>
module attributes {stable_mosaic.version = 11 : i64} {
  func.func @_supcon_tile_kernel(%arg0: i32, %arg1: i32, %arg2: i32, %arg3: memref<128x32xbf16, #tpu.memory_space<vmem>>, %arg4: memref<32x128xbf16, #tpu.memory_space<vmem>>, %arg5: memref<128x128xbf16, #tpu.memory_space<vmem>>, %arg6: memref<128x128xf32, #tpu.memory_space<vmem>>, %arg7: memref<128x128xf32, #tpu.memory_space<vmem>>, %arg8: memref<128x128xf32, #tpu.memory_space<vmem>>, %arg9: memref<128x128xf32, #tpu.memory_space<vmem>>) attributes {dimension_semantics = [#tpu.dimension_semantics<parallel>, #tpu.dimension_semantics<arbitrary>, #tpu.dimension_semantics<arbitrary>], iteration_bounds = array<i64: 1, 1, 4>, scalar_prefetch = 0 : i64, scratch_operands = 2 : i64, tpu.core_type = #tpu.core_type<tc>, window_params = [{transform_indices = @transform_0, window_bounds = array<i64: 128, 32>}, {transform_indices = @transform_1, window_bounds = array<i64: 32, 128>}, {transform_indices = @transform_2, window_bounds = array<i64: 128, 128>}, {transform_indices = @transform_3, window_bounds = array<i64: 128, 128>}, {transform_indices = @transform_4, window_bounds = array<i64: 128, 128>}]} {
    %c0_i32 = arith.constant 0 : i32
    %0 = arith.cmpi eq, %arg1, %c0_i32 : i32
    %c0_i32_0 = arith.constant 0 : i32
    %1 = arith.cmpi eq, %arg2, %c0_i32_0 : i32
    %2 = arith.andi %0, %1 : i1
    %3 = arith.extui %2 : i1 to i32
    %c0_i32_1 = arith.constant 0 : i32
    %4 = arith.cmpi ne, %3, %c0_i32_1 : i32
    scf.if %4 {
      %cst_11 = arith.constant 0.000000e+00 : f32
      %19 = vector.broadcast %cst_11 : f32 to vector<128x128xf32>
      %c0_12 = arith.constant 0 : index
      %c0_13 = arith.constant 0 : index
      %20 = vector.load %arg6[%c0_12, %c0_13] : memref<128x128xf32, #tpu.memory_space<vmem>>, vector<128x128xf32>
      tpu.vector_store %arg6[%c0_12, %c0_13], %19 {strides = array<i32>} : memref<128x128xf32, #tpu.memory_space<vmem>>, vector<128x128xf32>,
      %cst_14 = arith.constant 0.000000e+00 : f32
      %21 = vector.broadcast %cst_14 : f32 to vector<128x128xf32>
      %c0_15 = arith.constant 0 : index
      %c0_16 = arith.constant 0 : index
      %22 = vector.load %arg7[%c0_15, %c0_16] : memref<128x128xf32, #tpu.memory_space<vmem>>, vector<128x128xf32>
      tpu.vector_store %arg7[%c0_15, %c0_16], %21 {strides = array<i32>} : memref<128x128xf32, #tpu.memory_space<vmem>>, vector<128x128xf32>,
    } else {
    }
    %c0 = arith.constant 0 : index
    %c0_2 = arith.constant 0 : index
    %5 = vector.load %arg3[%c0, %c0_2] : memref<128x32xbf16, #tpu.memory_space<vmem>>, vector<128x32xbf16>
    %c0_3 = arith.constant 0 : index
    %c0_4 = arith.constant 0 : index
    %6 = vector.load %arg4[%c0_3, %c0_4] : memref<32x128xbf16, #tpu.memory_space<vmem>>, vector<32x128xbf16>
    %cst = arith.constant dense<0.000000e+00> : vector<128x128xf32>
    %7 = tpu.matmul %5, %6, %cst {dimension_numbers = #tpu.dot_dimension_numbers<[1], [0], [0], [1], [0, 0, 1, 1], [], []>} : vector<128x32xbf16>, vector<32x128xbf16>, vector<128x128xf32> -> vector<128x128xf32>
    %cst_5 = arith.constant 14.2857141 : f32
    %8 = vector.broadcast %cst_5 : f32 to vector<128x128xf32>
    %9 = arith.mulf %7, %8 : vector<128x128xf32>
    %cst_6 = arith.constant 14.2857141 : f32
    %10 = vector.broadcast %cst_6 : f32 to vector<128x128xf32>
    %11 = arith.subf %9, %10 : vector<128x128xf32>
    %12 = math.exp %11 : vector<128x128xf32>
    %c0_i32_7 = arith.constant 0 : i32
    %13 = arith.cmpi eq, %arg2, %c0_i32_7 : i32
    %14 = arith.extui %13 : i1 to i32
    %c0_i32_8 = arith.constant 0 : i32
    %15 = arith.cmpi ne, %14, %c0_i32_8 : i32
    scf.if %15 {
      %c0_11 = arith.constant 0 : index
      %c0_12 = arith.constant 0 : index
      %19 = vector.load %arg5[%c0_11, %c0_12] : memref<128x128xbf16, #tpu.memory_space<vmem>>, vector<128x128xbf16>
      %20 = arith.extf %19 : vector<128x128xbf16> to vector<128x128xf32>
      %c128_i32 = arith.constant 128 : i32
      %21 = arith.muli %arg0, %c128_i32 : i32
      %22 = tpu.iota {dimensions = array<i32: 0>} : vector<128x128xi32>
      %23 = vector.broadcast %21 : i32 to vector<128x128xi32>
      %24 = arith.addi %23, %22 : vector<128x128xi32>
      %c128_i32_13 = arith.constant 128 : i32
      %25 = arith.muli %arg1, %c128_i32_13 : i32
      %26 = tpu.iota {dimensions = array<i32: 1>} : vector<128x128xi32>
      %27 = vector.broadcast %25 : i32 to vector<128x128xi32>
      %28 = arith.addi %27, %26 : vector<128x128xi32>
      %c8_i32 = arith.constant 8 : i32
      %29 = vector.broadcast %c8_i32 : i32 to vector<128x128xi32>
      %30 = arith.cmpi slt, %28, %29 : vector<128x128xi32>
      %31 = arith.extui %30 : vector<128x128xi1> to vector<128x128xi32>
      %32 = arith.sitofp %31 : vector<128x128xi32> to vector<128x128xf32>
      %cst_14 = arith.constant 1.000000e+00 : f32
      %33 = vector.broadcast %cst_14 : f32 to vector<128x128xf32>
      %34 = arith.subf %33, %20 : vector<128x128xf32>
      %35 = arith.mulf %32, %34 : vector<128x128xf32>
      %c0_15 = arith.constant 0 : index
      %c0_16 = arith.constant 0 : index
      %36 = vector.load %arg8[%c0_15, %c0_16] : memref<128x128xf32, #tpu.memory_space<vmem>>, vector<128x128xf32>
      tpu.vector_store %arg8[%c0_15, %c0_16], %20 {strides = array<i32>} : memref<128x128xf32, #tpu.memory_space<vmem>>, vector<128x128xf32>,
      %c0_17 = arith.constant 0 : index
      %c0_18 = arith.constant 0 : index
      %37 = vector.load %arg9[%c0_17, %c0_18] : memref<128x128xf32, #tpu.memory_space<vmem>>, vector<128x128xf32>
      tpu.vector_store %arg9[%c0_17, %c0_18], %35 {strides = array<i32>} : memref<128x128xf32, #tpu.memory_space<vmem>>, vector<128x128xf32>,
      %38 = arith.cmpi ne, %24, %28 : vector<128x128xi32>
      %39 = arith.extui %38 : vector<128x128xi1> to vector<128x128xi32>
      %40 = arith.sitofp %39 : vector<128x128xi32> to vector<128x128xf32>
      %41 = arith.mulf %20, %40 : vector<128x128xf32>
      %42 = arith.mulf %35, %40 : vector<128x128xf32>
      %43 = arith.mulf %12, %42 : vector<128x128xf32>
      %44 = arith.mulf %11, %41 : vector<128x128xf32>
      %c0_19 = arith.constant 0 : index
      %c0_20 = arith.constant 0 : index
      %45 = vector.load %arg6[%c0_19, %c0_20] : memref<128x128xf32, #tpu.memory_space<vmem>>, vector<128x128xf32>
      %46 = arith.addf %45, %43 : vector<128x128xf32>
      %c0_21 = arith.constant 0 : index
      %c0_22 = arith.constant 0 : index
      %47 = vector.load %arg6[%c0_21, %c0_22] : memref<128x128xf32, #tpu.memory_space<vmem>>, vector<128x128xf32>
      tpu.vector_store %arg6[%c0_21, %c0_22], %46 {strides = array<i32>} : memref<128x128xf32, #tpu.memory_space<vmem>>, vector<128x128xf32>,
      %c0_23 = arith.constant 0 : index
      %c0_24 = arith.constant 0 : index
      %48 = vector.load %arg7[%c0_23, %c0_24] : memref<128x128xf32, #tpu.memory_space<vmem>>, vector<128x128xf32>
      %49 = arith.addf %48, %44 : vector<128x128xf32>
      %c0_25 = arith.constant 0 : index
      %c0_26 = arith.constant 0 : index
      %50 = vector.load %arg7[%c0_25, %c0_26] : memref<128x128xf32, #tpu.memory_space<vmem>>, vector<128x128xf32>
      tpu.vector_store %arg7[%c0_25, %c0_26], %49 {strides = array<i32>} : memref<128x128xf32, #tpu.memory_space<vmem>>, vector<128x128xf32>,
    } else {
    }
    %c0_i32_9 = arith.constant 0 : i32
    %16 = arith.cmpi ne, %arg2, %c0_i32_9 : i32
    %17 = arith.extui %16 : i1 to i32
    %c0_i32_10 = arith.constant 0 : i32
    %18 = arith.cmpi ne, %17, %c0_i32_10 : i32
    scf.if %18 {
      %c0_11 = arith.constant 0 : index
      %c0_12 = arith.constant 0 : index
      %19 = vector.load %arg8[%c0_11, %c0_12] : memref<128x128xf32, #tpu.memory_space<vmem>>, vector<128x128xf32>
      %c0_13 = arith.constant 0 : index
      %c0_14 = arith.constant 0 : index
      %20 = vector.load %arg9[%c0_13, %c0_14] : memref<128x128xf32, #tpu.memory_space<vmem>>, vector<128x128xf32>
      %21 = arith.mulf %12, %20 : vector<128x128xf32>
      %22 = arith.mulf %11, %19 : vector<128x128xf32>
      %c0_15 = arith.constant 0 : index
      %c0_16 = arith.constant 0 : index
      %23 = vector.load %arg6[%c0_15, %c0_16] : memref<128x128xf32, #tpu.memory_space<vmem>>, vector<128x128xf32>
      %24 = arith.addf %23, %21 : vector<128x128xf32>
      %c0_17 = arith.constant 0 : index
      %c0_18 = arith.constant 0 : index
      %25 = vector.load %arg6[%c0_17, %c0_18] : memref<128x128xf32, #tpu.memory_space<vmem>>, vector<128x128xf32>
      tpu.vector_store %arg6[%c0_17, %c0_18], %24 {strides = array<i32>} : memref<128x128xf32, #tpu.memory_space<vmem>>, vector<128x128xf32>,
      %c0_19 = arith.constant 0 : index
      %c0_20 = arith.constant 0 : index
      %26 = vector.load %arg7[%c0_19, %c0_20] : memref<128x128xf32, #tpu.memory_space<vmem>>, vector<128x128xf32>
      %27 = arith.addf %26, %22 : vector<128x128xf32>
      %c0_21 = arith.constant 0 : index
      %c0_22 = arith.constant 0 : index
      %28 = vector.load %arg7[%c0_21, %c0_22] : memref<128x128xf32, #tpu.memory_space<vmem>>, vector<128x128xf32>
      tpu.vector_store %arg7[%c0_21, %c0_22], %27 {strides = array<i32>} : memref<128x128xf32, #tpu.memory_space<vmem>>, vector<128x128xf32>,
    } else {
    }
    return
  }
  func.func @transform_0(%arg0: i32, %arg1: i32, %arg2: i32) -> (i32, i32) {
    %c0_i32 = arith.constant 0 : i32
    %c0_i32_0 = arith.constant 0 : i32
    return %arg0, %c0_i32 : i32, i32
  }
  func.func @transform_1(%arg0: i32, %arg1: i32, %arg2: i32) -> (i32, i32) {
    %c1_i32 = arith.constant 1 : i32
    %0 = arith.muli %arg2, %c1_i32 : i32
    %1 = arith.addi %0, %arg1 : i32
    %c0_i32 = arith.constant 0 : i32
    %c0_i32_0 = arith.constant 0 : i32
    return %c0_i32, %1 : i32, i32
  }
  func.func @transform_2(%arg0: i32, %arg1: i32, %arg2: i32) -> (i32, i32) {
    %c0_i32 = arith.constant 0 : i32
    return %arg0, %arg1 : i32, i32
  }
  func.func @transform_3(%arg0: i32, %arg1: i32, %arg2: i32) -> (i32, i32) {
    %c0_i32 = arith.constant 0 : i32
    %c0_i32_0 = arith.constant 0 : i32
    return %arg0, %c0_i32 : i32, i32
  }
  func.func @transform_4(%arg0: i32, %arg1: i32, %arg2: i32) -> (i32, i32) {
    %c0_i32 = arith.constant 0 : i32
    %c0_i32_0 = arith.constant 0 : i32
    return %arg0, %c0_i32 : i32, i32
  }
}

</mosaic_0001>

<llo_original>
// kernel: tpu_custom_call.1
$region0: #{tpu_custom_call.1}
  #allocation0 [shape = 'u32[]', space=smem, size = 0x4, offset = 0x4, fixed_abs, tag = 'smem constant byte address 0x4 - core index']
  #allocation1 [shape = 'u32[144,128]{1,0:T(1,128)}', space=vmem, size = 0x12000, scoped, tag = 'internal scratch']
  #allocation2 [shape = 'f32[128,128]{1,0:T(8,128)}', space=vmem, size = 0x10000, scoped, tag = 'scratch operand']
  #allocation3 [shape = 'f32[128,128]{1,0:T(8,128)}', space=vmem, size = 0x10000, scoped, tag = 'scratch operand']
  %s0 = inlined_call_operand.vmem [shape: bf16[128,32], index: 0, kind: input, shape index: {}]
  %s1 = inlined_call_operand.vmem [shape: bf16[32,512], index: 1, kind: input, shape index: {}]
  %s2 = inlined_call_operand.hbm [shape: bf16[128,128], index: 2, kind: input, shape index: {}]
  %s3 = inlined_call_operand.hbm [shape: f32[128,128], index: 3, kind: output, shape index: {0}]
  %s4 = inlined_call_operand.hbm [shape: f32[128,128], index: 4, kind: output, shape index: {1}]
  %5 = xla_tuple %s3, %s4
  %s6 = sld [smem:[#allocation0]]
  $region110: #{tpu_custom_call.1} parent=0
    _
  %s8 = ssub.s32 1, %s6
  %s9 = scalar_select 0, %s8, %s6
  $region1: #{tpu_custom_call.1} parent=0
    #allocation4 [shape = 'u8[16384]{0}', space=vmem, size = 0x4000, scoped, tag = 'input window, operand 1']
    #allocation5 [shape = 'u8[32768]{0}', space=vmem, size = 0x8000, scoped, tag = 'input window, operand 2, single buffered']
    #allocation6 [shape = 's32[2]{0}', space=sflag, size = 0x8, scoped, tag = 'scoped memory for tpu_custom_call.1']
    #allocation7 [shape = 's32[2]{0}', space=sflag, size = 0x8, scoped, tag = 'scoped memory for tpu_custom_call.1']
    #allocation8 [shape = 'u8[65536]{0}', space=vmem, size = 0x10000, scoped, tag = 'output window, operand 0, single buffered']
    #allocation9 [shape = 'u8[65536]{0}', space=vmem, size = 0x10000, scoped, tag = 'output window, operand 1, single buffered']
    #allocation10 [shape = 's32[1]{0}', space=sflag, size = 0x4, scoped, tag = 'scoped memory for tpu_custom_call.1']
    %10 = vsyncpa [#allocation6], 0
    %11 = vsyncpa [#allocation7], 0
    %12 = vsyncpa [#allocation10], 0
    loop: start=0, step=1, limit=6
    $region2: #{tpu_custom_call.1} parent=1 // loop_pre_header
      _
    $region3: #{tpu_custom_call.1} parent=1 // loop_header
      %s14 = sphi 0, %s18
      %p15 = scmp.ge.s32.totalorder %s14, 6
      %s21 = sphi 0, %s40
      %s22 = sphi 0, %s36
      %s23 = sphi 0, %s32
      %s24 = sphi 0, %s21
      %s25 = sphi 0, %s22
      %s26 = sphi 0, %s23
      %s27 = sphi 0, %s24
      %s28 = sphi 0, %s25
      %s29 = sphi 0, %s26
      %s43 = sphi 0, %s45
      %s46 = sphi 0, %s43
      %s47 = sphi 0, %s46
      %s63 = sphi 0, %s47
      %s71 = sphi 0, %s73
      %s74 = sphi 0, %s71
      %s75 = sphi 0, %s74
      %s91 = sphi 0, %s75
      %s99 = sphi 0, %s101
      %s102 = sphi 0, %s99
      %s103 = sphi 0, %s102
      %s119 = sphi 0, %s103
      %s125 = sphi 0, %s127
      %s128 = sphi 0, %s125
      %s129 = sphi 0, %s128
      %s145 = sphi 0, %s129
      %s151 = sphi 0, %s153
      %s154 = sphi 0, %s151
      %s155 = sphi 0, %s154
      %s171 = sphi 0, %s155
    $region4: #{tpu_custom_call.1} parent=1 // loop_header_branch
      %17 = sbr.rel (%p15) target = $region8
    $region5: #{tpu_custom_call.1} parent=1 // loop_body
      %s19 = ssub.s32 %s14, 1
      %s20 = ssub.s32 %s14, 2
      %s30 = sadd.s32 1, %s23
      %p31 = scmp.ge.s32.totalorder %s30, 4
      %s32 = scalar_select %p31, 0, %s30
      %s33 = sadd.s32 1, %s22
      %s34 = scalar_select %p31, %s33, %s22
      %p35 = scmp.ge.s32.totalorder %s34, 1
      %s36 = scalar_select %p35, 0, %s34
      %s37 = sadd.s32 1, %s21
      %s38 = scalar_select %p35, %s37, %s21
      %p39 = scmp.ge.s32.totalorder %s38, 1
      %s40 = scalar_select %p39, 0, %s38
      %s41 = ssub.s32 %s21, %s40
      %p42 = scmp.eq.s32.totalorder %s41, 0
      %s44 = sadd.s32 %s43, 1
      %s45 = scalar_select %p42, %s43, %s44
      %p48 = pneg %p42
      %p49 = scmp.eq.s32.totalorder %s14, 3
      %p50 = por %p48, %p49
      %p51 = scmp.ne.s32.totalorder %s43, %s46
      %p52 = scmp.eq.s32.totalorder %s14, 0
      %p53 = por %p51, %p52
      %p54 = scmp.ne.s32.totalorder %s43, %s46
      %p55 = scmp.eq.s32.totalorder %s19, 3
      %p56 = por %p54, %p55
      %p57 = scmp.ne.s32.totalorder %s46, %s47
      %p58 = scmp.eq.s32.totalorder %s19, 0
      %p59 = por %p57, %p58
      %p60 = scmp.ne.s32.totalorder %s46, %s47
      %p61 = scmp.eq.s32.totalorder %s20, 3
      %p62 = por %p60, %p61
      %p64 = scmp.ne.s32.totalorder %s47, %s63
      %p65 = scmp.eq.s32.totalorder %s20, 0
      %p66 = por %p64, %p65
      %s67 = sadd.s32 %s23, %s22
      %s68 = sadd.s32 %s32, %s36
      %s69 = ssub.s32 %s67, %s68
      %p70 = scmp.eq.s32.totalorder %s69, 0
      %s72 = sadd.s32 %s71, 1
      %s73 = scalar_select %p70, %s71, %s72
      %p76 = pneg %p70
      %p77 = scmp.eq.s32.totalorder %s14, 3
      %p78 = por %p76, %p77
      %p79 = scmp.ne.s32.totalorder %s71, %s74
      %p80 = scmp.eq.s32.totalorder %s14, 0
      %p81 = por %p79, %p80
      %p82 = scmp.ne.s32.totalorder %s71, %s74
      %p83 = scmp.eq.s32.totalorder %s19, 3
      %p84 = por %p82, %p83
      %p85 = scmp.ne.s32.totalorder %s74, %s75
      %p86 = scmp.eq.s32.totalorder %s19, 0
      %p87 = por %p85, %p86
      %p88 = scmp.ne.s32.totalorder %s74, %s75
      %p89 = scmp.eq.s32.totalorder %s20, 3
      %p90 = por %p88, %p89
      %p92 = scmp.ne.s32.totalorder %s75, %s91
      %p93 = scmp.eq.s32.totalorder %s20, 0
      %p94 = por %p92, %p93
      %s95 = ssub.s32 %s21, %s40
      %s96 = ssub.s32 %s22, %s36
      %s97 = sor.u32 %s95, %s96
      %p98 = scmp.eq.s32.totalorder %s97, 0
      %s100 = sadd.s32 %s99, 1
      %s101 = scalar_select %p98, %s99, %s100
      %p104 = pneg %p98
      %p105 = scmp.eq.s32.totalorder %s14, 3
      %p106 = por %p104, %p105
      %p107 = scmp.ne.s32.totalorder %s99, %s102
      %p108 = scmp.eq.s32.totalorder %s14, 0
      %p109 = por %p107, %p108
      %p110 = scmp.ne.s32.totalorder %s99, %s102
      %p111 = scmp.eq.s32.totalorder %s19, 3
      %p112 = por %p110, %p111
      %p113 = scmp.ne.s32.totalorder %s102, %s103
      %p114 = scmp.eq.s32.totalorder %s19, 0
      %p115 = por %p113, %p114
      %p116 = scmp.ne.s32.totalorder %s102, %s103
      %p117 = scmp.eq.s32.totalorder %s20, 3
      %p118 = por %p116, %p117
      %p120 = scmp.ne.s32.totalorder %s103, %s119
      %p121 = scmp.eq.s32.totalorder %s20, 0
      %p122 = por %p120, %p121
      %s123 = ssub.s32 %s21, %s40
      %p124 = scmp.eq.s32.totalorder %s123, 0
      %s126 = sadd.s32 %s125, 1
      %s127 = scalar_select %p124, %s125, %s126
      %p130 = pneg %p124
      %p131 = scmp.eq.s32.totalorder %s14, 3
      %p132 = por %p130, %p131
      %p133 = scmp.ne.s32.totalorder %s125, %s128
      %p134 = scmp.eq.s32.totalorder %s14, 0
      %p135 = por %p133, %p134
      %p136 = scmp.ne.s32.totalorder %s125, %s128
      %p137 = scmp.eq.s32.totalorder %s19, 3
      %p138 = por %p136, %p137
      %p139 = scmp.ne.s32.totalorder %s128, %s129
      %p140 = scmp.eq.s32.totalorder %s19, 0
      %p141 = por %p139, %p140
      %p142 = scmp.ne.s32.totalorder %s128, %s129
      %p143 = scmp.eq.s32.totalorder %s20, 3
      %p144 = por %p142, %p143
      %p146 = scmp.ne.s32.totalorder %s129, %s145
      %p147 = scmp.eq.s32.totalorder %s20, 0
      %p148 = por %p146, %p147
      %s149 = ssub.s32 %s21, %s40
      %p150 = scmp.eq.s32.totalorder %s149, 0
      %s152 = sadd.s32 %s151, 1
      %s153 = scalar_select %p150, %s151, %s152
      %p156 = pneg %p150
      %p157 = scmp.eq.s32.totalorder %s14, 3
      %p158 = por %p156, %p157
      %p159 = scmp.ne.s32.totalorder %s151, %s154
      %p160 = scmp.eq.s32.totalorder %s14, 0
      %p161 = por %p159, %p160
      %p162 = scmp.ne.s32.totalorder %s151, %s154
      %p163 = scmp.eq.s32.totalorder %s19, 3
      %p164 = por %p162, %p163
      %p165 = scmp.ne.s32.totalorder %s154, %s155
      %p166 = scmp.eq.s32.totalorder %s19, 0
      %p167 = por %p165, %p166
      %p168 = scmp.ne.s32.totalorder %s154, %s155
      %p169 = scmp.eq.s32.totalorder %s20, 3
      %p170 = por %p168, %p169
      %p172 = scmp.ne.s32.totalorder %s155, %s171
      %p173 = scmp.eq.s32.totalorder %s20, 0
      %p174 = por %p172, %p173
      %p175 = scmp.le.s32.totalorder 1, %s14
      %p176 = scmp.lt.s32.totalorder %s14, 5
      %p177 = pnand %p175, %p176
      %p178 = pneg %p177
      // Predicated region
      $region9: #{tpu_custom_call.1} parent=5 // pred_check
        _
      $region10: #{tpu_custom_call.1} parent=5 // pred_check_branch
        %180 = sbr.rel (%p177) target = $region12
      $region11: #{tpu_custom_call.1} parent=5 // pred_region
        %s181 = ssub.s32 %s14, 1
        // Predicated region
        $region13: #{tpu_custom_call.1} parent=11 // pred_check
          %p182 = pneg %p59
        $region14: #{tpu_custom_call.1} parent=11 // pred_check_branch
          %184 = sbr.rel (%p182) target = $region16
        $region15: #{tpu_custom_call.1} parent=11 // pred_region
          %s185 = smul.u32 16, %s24
          %p186 = scmp.lt.s32.totalorder %s185, 15
          %s187 = scalar_select %p186, %s185, 15
          %s188 = smul.addr %s187, 4
          %s189 = scalar_lea.vmem %s0, %s188
          %s190 = smul.u32 16, %s24
        $region16: #{tpu_custom_call.1} parent=11 // pred_fallthru
          _
        // Predicated region
        $region17: #{tpu_custom_call.1} parent=11 // pred_check
          %p191 = pneg %p115
        $region18: #{tpu_custom_call.1} parent=11 // pred_check_branch
          %193 = sbr.rel (%p191) target = $region20
        $region19: #{tpu_custom_call.1} parent=11 // pred_region
          %s194 = smul.u32 16, %s24
          %s196 = ssub.s32 1024, 1024
          %197 = vsyncadd [#allocation6], %s196
          %s198 = sadd.s32 %s25, %s194
          %s199 = smul.addr %s198, 64
          %s200 = scalar_lea.hbm %s2, %s199
          %s201 = sshll.u32 [#allocation5], 4
          %s202 = int_to_ptr.vmem [resolvable:$true] %s201
          %207 = dma.hbm_to_vmem [thread:$0]  %s200, 1024, %s202, [#allocation6], 64, 64, 4
        $region20: #{tpu_custom_call.1} parent=11 // pred_fallthru
          _
      $region12: #{tpu_custom_call.1} parent=5 // pred_fallthru
        _
      %p208 = scmp.lt.s32.totalorder %s14, 4
      // Predicated region
      $region21: #{tpu_custom_call.1} parent=5 // pred_check
        %p209 = pneg %p208
      $region22: #{tpu_custom_call.1} parent=5 // pred_check_branch
        %211 = sbr.rel (%p209) target = $region24
      $region23: #{tpu_custom_call.1} parent=5 // pred_region
        // Predicated region
        $region25: #{tpu_custom_call.1} parent=23 // pred_check
          %p212 = pneg %p81
        $region26: #{tpu_custom_call.1} parent=23 // pred_check_branch
          %214 = sbr.rel (%p212) target = $region28
        $region27: #{tpu_custom_call.1} parent=23 // pred_region
          %s215 = sand.u32 %s71, 1
          %s216 = sand.u32 %s71, 1
          %s217 = smul.addr %s216, 16
          %s218 = scalar_lea.vmem [#allocation4], %s217
          %s219 = sadd.s32 %s23, %s22
          %s220 = smul.addr %s219, 4
          %s221 = scalar_lea.vmem %s1, %s220
          // Predicated region
          $region29: #{tpu_custom_call.1} parent=27 // pred_check
            _
          $region30: #{tpu_custom_call.1} parent=27 // pred_check_branch
            %223 = sbr.rel (0) target = $region32
          $region31: #{tpu_custom_call.1} parent=27 // pred_region
            // Predicated region
            $region33: #{tpu_custom_call.1} parent=31 // pred_check
              _
            $region34: #{tpu_custom_call.1} parent=31 // pred_check_branch
              %225 = sbr.rel target = $region36
            $region35: #{tpu_custom_call.1} parent=31 // pred_region
              // Predicated region
              $region48: #{tpu_custom_call.1} parent=35 // pred_check
                _
              $region49: #{tpu_custom_call.1} parent=35 // pred_check_branch
                %247 = sbr.rel (0) target = $region51
              $region50: #{tpu_custom_call.1} parent=35 // pred_region
                loop: start=0, step=1, limit=1
                $region52: #{tpu_custom_call.1} parent=50 // loop_pre_header
                  _
                $region53: #{tpu_custom_call.1} parent=50 // loop_header
                  %s249 = sphi 0, %s253
                  %p250 = scmp.ge.s32.totalorder %s249, 1
                  %s254 = sphi %s221, %s221
                  %s255 = sphi %s218, %s218
                $region54: #{tpu_custom_call.1} parent=50 // loop_header_branch
                  %252 = sbr.rel (%p250) target = $region58
                $region55: #{tpu_custom_call.1} parent=50 // loop_body
                  _
                $region56: #{tpu_custom_call.1} parent=50 // loop_footer
                  %s253 = sadd.s32 1, %s249
                $region57: #{tpu_custom_call.1} parent=50 // loop_footer_branch
                  %248 = sbr.rel target = $region53
                $region58: #{tpu_custom_call.1} parent=50 // loop_exit
                  _
                %s257 = ssub.s32 16, 1
                loop: start=0, step=1, limit=1
                $region59: #{tpu_custom_call.1} parent=50 // loop_pre_header
                  _
                $region60: #{tpu_custom_call.1} parent=50 // loop_header
                  %s259 = sphi 0, %s263
                  %p260 = scmp.ge.s32.totalorder %s259, 1
                  %s264 = sphi %s221, %s221
                  %s265 = sphi %s218, %s218
                $region61: #{tpu_custom_call.1} parent=50 // loop_header_branch
                  %262 = sbr.rel (%p260) target = $region65
                $region62: #{tpu_custom_call.1} parent=50 // loop_body
                  %v266 = vld [vmem:[%s264] sm:%s257]
                  %267 = vst [vmem:[%s265] sm:%s257] %v266
                  %v268 = vld [vmem:[%s264 + $0x10] sm:%s257]
                  %269 = vst [vmem:[%s265 + $0x4] sm:%s257] %v268
                  %v270 = vld [vmem:[%s264 + $0x20] sm:%s257]
                  %271 = vst [vmem:[%s265 + $0x8] sm:%s257] %v270
                  %v272 = vld [vmem:[%s264 + $0x30] sm:%s257]
                  %273 = vst [vmem:[%s265 + $0xc] sm:%s257] %v272
                $region63: #{tpu_custom_call.1} parent=50 // loop_footer
                  %s263 = sadd.s32 1, %s259
                $region64: #{tpu_custom_call.1} parent=50 // loop_footer_branch
                  %258 = sbr.rel target = $region60
                $region65: #{tpu_custom_call.1} parent=50 // loop_exit
                  _
              $region51: #{tpu_custom_call.1} parent=35 // pred_fallthru
                _
            $region36: #{tpu_custom_call.1} parent=31 // pred_fallthru
              _
            // Predicated region
            $region37: #{tpu_custom_call.1} parent=31 // pred_check
              _
            $region38: #{tpu_custom_call.1} parent=31 // pred_check_branch
              %227 = sbr.rel (0) target = $region40
            $region39: #{tpu_custom_call.1} parent=31 // pred_region
              %s229 = ssub.s32 16, 1
              loop: start=0, step=1, limit=1
              $region41: #{tpu_custom_call.1} parent=39 // loop_pre_header
                _
              $region42: #{tpu_custom_call.1} parent=39 // loop_header
                %s231 = sphi 0, %s235
                %p232 = scmp.ge.s32.totalorder %s231, 1
                %s236 = sphi %s221, %s221
                %s237 = sphi %s218, %s218
              $region43: #{tpu_custom_call.1} parent=39 // loop_header_branch
                %234 = sbr.rel (%p232) target = $region47
              $region44: #{tpu_custom_call.1} parent=39 // loop_body
                %v238 = vld [vmem:[%s236] sm:%s229]
                %239 = vst [vmem:[%s237] sm:%s229] %v238
                %v240 = vld [vmem:[%s236 + $0x10] sm:%s229]
                %241 = vst [vmem:[%s237 + $0x4] sm:%s229] %v240
                %v242 = vld [vmem:[%s236 + $0x20] sm:%s229]
                %243 = vst [vmem:[%s237 + $0x8] sm:%s229] %v242
                %v244 = vld [vmem:[%s236 + $0x30] sm:%s229]
                %245 = vst [vmem:[%s237 + $0xc] sm:%s229] %v244
              $region45: #{tpu_custom_call.1} parent=39 // loop_footer
                %s235 = sadd.s32 1, %s231
              $region46: #{tpu_custom_call.1} parent=39 // loop_footer_branch
                %230 = sbr.rel target = $region42
              $region47: #{tpu_custom_call.1} parent=39 // loop_exit
                _
            $region40: #{tpu_custom_call.1} parent=31 // pred_fallthru
              _
          $region32: #{tpu_custom_call.1} parent=27 // pred_fallthru
            _
          %274 = vnop
        $region28: #{tpu_custom_call.1} parent=23 // pred_fallthru
          _
      $region24: #{tpu_custom_call.1} parent=5 // pred_fallthru
        _
      %p275 = scmp.le.s32.totalorder 1, %s14
      %p276 = scmp.lt.s32.totalorder %s14, 5
      %p277 = pnand %p275, %p276
      %p278 = pneg %p277
      // Predicated region
      $region66: #{tpu_custom_call.1} parent=5 // pred_check
        _
      $region67: #{tpu_custom_call.1} parent=5 // pred_check_branch
        %280 = sbr.rel (%p277) target = $region69
      $region68: #{tpu_custom_call.1} parent=5 // pred_region
        %s281 = ssub.s32 %s14, 1
        %s282 = sand.u32 %s74, 1
        %s283 = sand.u32 %s74, 1
        %s284 = smul.addr %s283, 16
        %s285 = scalar_lea.vmem [#allocation4], %s284
        // Predicated region
        $region70: #{tpu_custom_call.1} parent=68 // pred_check
          %p286 = pneg %p87
        $region71: #{tpu_custom_call.1} parent=68 // pred_check_branch
          %288 = sbr.rel (%p286) target = $region73
        $region72: #{tpu_custom_call.1} parent=68 // pred_region
          _
        $region73: #{tpu_custom_call.1} parent=68 // pred_fallthru
          _
        // Predicated region
        $region74: #{tpu_custom_call.1} parent=68 // pred_check
          %p289 = pneg %p115
        $region75: #{tpu_custom_call.1} parent=68 // pred_check_branch
          %291 = sbr.rel (%p289) target = $region77
        $region76: #{tpu_custom_call.1} parent=68 // pred_region
          %292 = dma.done [#allocation6], 1024
        $region77: #{tpu_custom_call.1} parent=68 // pred_fallthru
          _
        %s293 = smul.u32 16, %s24
        %p294 = scmp.lt.s32.totalorder %s293, 15
        %s295 = scalar_select %p294, %s293, 15
        %s296 = smul.addr %s295, 4
        %s297 = scalar_lea.vmem %s0, %s296
        %p298 = pneg %p59
        %p299 = pneg %p56
        %s300 = sand.u32 %s74, 1
        %s301 = sand.u32 %s74, 1
        %s302 = smul.addr %s301, 16
        %s303 = scalar_lea.vmem [#allocation4], %s302
        %p304 = pneg %p87
        %p305 = pneg %p84
        %p306 = pneg %p115
        %p307 = pneg %p112
        %p308 = pneg %p141
        %p309 = pneg %p138
        %p310 = pneg %p167
        %p311 = pneg %p164
        %s312 = smul.u32 16, %s24
        %p313 = scmp.lt.s32.totalorder %s312, 15
        %s314 = scalar_select %p313, %s312, 15
        %s315 = smul.addr %s314, 4
        %s316 = scalar_lea.vmem %s0, %s315
        %s317 = smul.u32 16, %s24
        %s318 = sadd.s32 %s26, %s25
        %s319 = smul.u32 16, %s24
        %s320 = smul.u32 16, %s24
        %s321 = smul.u32 16, %s24
        %p323 = scmp.eq.s32.totalorder %s25, 0
        %p324 = scmp.eq.s32.totalorder %s26, 0
        %p325 = pnand %p323, %p324
        %p326 = pneg %p325
        // Predicated region
        $region78: #{tpu_custom_call.1} parent=68 // pred_check
          _
        $region79: #{tpu_custom_call.1} parent=68 // pred_check_branch
          %328 = sbr.rel (%p325) target = $region81
        $region80: #{tpu_custom_call.1} parent=68 // pred_region
          %329 = vst [vmem:[#allocation8] sm:$0xff] 0.0
          %330 = vst [vmem:[#allocation8 + $0x8] sm:$0xff] 0.0
          %331 = vst [vmem:[#allocation8 + $0x10] sm:$0xff] 0.0
          %332 = vst [vmem:[#allocation8 + $0x18] sm:$0xff] 0.0
          %333 = vst [vmem:[#allocation8 + $0x20] sm:$0xff] 0.0
          %334 = vst [vmem:[#allocation8 + $0x28] sm:$0xff] 0.0
          %335 = vst [vmem:[#allocation8 + $0x30] sm:$0xff] 0.0
          %336 = vst [vmem:[#allocation8 + $0x38] sm:$0xff] 0.0
          %337 = vst [vmem:[#allocation8 + $0x40] sm:$0xff] 0.0
          %338 = vst [vmem:[#allocation8 + $0x48] sm:$0xff] 0.0
          %339 = vst [vmem:[#allocation8 + $0x50] sm:$0xff] 0.0
          %340 = vst [vmem:[#allocation8 + $0x58] sm:$0xff] 0.0
          %341 = vst [vmem:[#allocation8 + $0x60] sm:$0xff] 0.0
          %342 = vst [vmem:[#allocation8 + $0x68] sm:$0xff] 0.0
          %343 = vst [vmem:[#allocation8 + $0x70] sm:$0xff] 0.0
          %344 = vst [vmem:[#allocation8 + $0x78] sm:$0xff] 0.0
          %345 = vst [vmem:[#allocation9] sm:$0xff] 0.0
          %346 = vst [vmem:[#allocation9 + $0x8] sm:$0xff] 0.0
          %347 = vst [vmem:[#allocation9 + $0x10] sm:$0xff] 0.0
          %348 = vst [vmem:[#allocation9 + $0x18] sm:$0xff] 0.0
          %349 = vst [vmem:[#allocation9 + $0x20] sm:$0xff] 0.0
          %350 = vst [vmem:[#allocation9 + $0x28] sm:$0xff] 0.0
          %351 = vst [vmem:[#allocation9 + $0x30] sm:$0xff] 0.0
          %352 = vst [vmem:[#allocation9 + $0x38] sm:$0xff] 0.0
          %353 = vst [vmem:[#allocation9 + $0x40] sm:$0xff] 0.0
          %354 = vst [vmem:[#allocation9 + $0x48] sm:$0xff] 0.0
          %355 = vst [vmem:[#allocation9 + $0x50] sm:$0xff] 0.0
          %356 = vst [vmem:[#allocation9 + $0x58] sm:$0xff] 0.0
          %357 = vst [vmem:[#allocation9 + $0x60] sm:$0xff] 0.0
          %358 = vst [vmem:[#allocation9 + $0x68] sm:$0xff] 0.0
          %359 = vst [vmem:[#allocation9 + $0x70] sm:$0xff] 0.0
          %360 = vst [vmem:[#allocation9 + $0x78] sm:$0xff] 0.0
        $region81: #{tpu_custom_call.1} parent=68 // pred_fallthru
          _
        %v361 = vld [vmem:[%s316] sm:$0xf]
        %v362 = vld [vmem:[%s316 + $0x4] sm:$0xf]
        %v363 = vld [vmem:[%s316 + $0x8] sm:$0xf]
        %v364 = vld [vmem:[%s316 + $0xc] sm:$0xf]
        %v365 = vld [vmem:[%s316 + $0x10] sm:$0xf]
        %v366 = vld [vmem:[%s316 + $0x14] sm:$0xf]
        %v367 = vld [vmem:[%s316 + $0x18] sm:$0xf]
        %v368 = vld [vmem:[%s316 + $0x1c] sm:$0xf]
        %v369 = vld [vmem:[%s316 + $0x20] sm:$0xf]
        %v370 = vld [vmem:[%s316 + $0x24] sm:$0xf]
        %v371 = vld [vmem:[%s316 + $0x28] sm:$0xf]
        %v372 = vld [vmem:[%s316 + $0x2c] sm:$0xf]
        %v373 = vld [vmem:[%s316 + $0x30] sm:$0xf]
        %v374 = vld [vmem:[%s316 + $0x34] sm:$0xf]
        %v375 = vld [vmem:[%s316 + $0x38] sm:$0xf]
        %v376 = vld [vmem:[%s316 + $0x3c] sm:$0xf]
        %v377 = vld [vmem:[%s285] sm:$0xf]
        %v378 = vld [vmem:[%s285 + $0x4] sm:$0xf]
        %v379 = vld [vmem:[%s285 + $0x8] sm:$0xf]
        %v380 = vld [vmem:[%s285 + $0xc] sm:$0xf]
        %v397 = vunpack.c.l.b16 %v361
        %v398 = vunpack.c.l.b16 %v362
        %v399 = vunpack.c.l.b16 %v363
        %v400 = vunpack.c.l.b16 %v364
        %v401 = vunpack.c.l.b16 %v365
        %v402 = vunpack.c.l.b16 %v366
        %v403 = vunpack.c.l.b16 %v367
        %v404 = vunpack.c.l.b16 %v368
        %v405 = vunpack.c.l.b16 %v369
        %v406 = vunpack.c.l.b16 %v370
        %v407 = vunpack.c.l.b16 %v371
        %v408 = vunpack.c.l.b16 %v372
        %v409 = vunpack.c.l.b16 %v373
        %v410 = vunpack.c.l.b16 %v374
        %v411 = vunpack.c.l.b16 %v375
        %v412 = vunpack.c.l.b16 %v376
        %v413 = vpack.c.b16 %v398, %v397
        %v414 = vpack.c.b16 %v400, %v399
        %v415 = vpack.c.b16 %v402, %v401
        %v416 = vpack.c.b16 %v404, %v403
        %v417 = vpack.c.b16 %v406, %v405
        %v418 = vpack.c.b16 %v408, %v407
        %v419 = vpack.c.b16 %v410, %v409
        %v420 = vpack.c.b16 %v412, %v411
        %v425 = vunpack.c.l.b16 %v377
        %v426 = vunpack.c.l.b16 %v378
        %v427 = vunpack.c.l.b16 %v379
        %v428 = vunpack.c.l.b16 %v380
        %v429 = vpack.c.b16 %v426, %v425
        %v430 = vpack.c.b16 %v428, %v427
        %vm433 = vcmask 261120
        %v435 = vsel %vm433, %v413, 0
        %v438 = vsel %vm433, %v414, 0
        %v441 = vsel %vm433, %v415, 0
        %v444 = vsel %vm433, %v416, 0
        %v447 = vsel %vm433, %v417, 0
        %v450 = vsel %vm433, %v418, 0
        %v453 = vsel %vm433, %v419, 0
        %v456 = vsel %vm433, %v420, 0
        %458 = vmatprep.subr.bf16.mxu0 0
        %459 = vmatpush1.bf16.msra.mxu0 0
        %460 = vmatprep.subr.bf16.mxu0 0
        %461 = vmatpush1.bf16.msra.mxu0 0
        %462 = vmatprep.subr.bf16.mxu0 0
        %463 = vmatpush1.bf16.msra.mxu0 0
        %464 = vmatprep.subr.bf16.mxu0 0
        %465 = vmatpush1.bf16.msra.mxu0 0
        %466 = vmatprep.subr.bf16.mxu0 0
        %467 = vmatpush1.bf16.msra.mxu0 0
        %468 = vmatprep.subr.bf16.mxu0 0
        %469 = vmatpush1.bf16.msra.mxu0 0
        %470 = vmatprep.subr.bf16.mxu0 0
        %471 = vmatpush1.bf16.msra.mxu0 %v430
        %472 = vmatprep.subr.bf16.mxu0 0
        %473 = vmatpush1.bf16.msra.mxu0 %v429
        %474 = vmatprep.subr.bf16.mxu0 0
        %475 = vmatpush2.bf16.msra.mxu0 0
        %476 = vmatprep.subr.bf16.mxu0 0
        %477 = vmatpush2.bf16.msra.mxu0 0
        %478 = vmatprep.subr.bf16.mxu0 0
        %479 = vmatpush2.bf16.msra.mxu0 0
        %480 = vmatprep.subr.bf16.mxu0 0
        %481 = vmatpush2.bf16.msra.mxu0 0
        %482 = vmatprep.subr.bf16.mxu0 0
        %483 = vmatpush2.bf16.msra.mxu0 0
        %484 = vmatprep.subr.bf16.mxu0 0
        %485 = vmatpush2.bf16.msra.mxu0 0
        %486 = vmatprep.subr.bf16.mxu0 0
        %487 = vmatpush2.bf16.msra.mxu0 0
        %488 = vmatprep.subr.bf16.mxu0 0
        %489 = vmatpush2.bf16.msra.mxu0 0
        %490 = vmatprep.mubr.bf16.mxu0 0
        %491 = vmatmul.mubr.bf16.gmra.mxu0 %v435
        %v492 = vpop.f32.mrf.mxu0
        %v493 = vadd.f32 0.0, %v492
        %v494 = vpop.f32.mrf.mxu0
        %v495 = vpop.f32.mrf.mxu0
        %v496 = vadd.f32 0.0, %v495
        %v497 = vpop.f32.mrf.mxu0
        %498 = vmatprep.mubr.bf16.mxu0 0
        %499 = vmatmul.mubr.bf16.gmra.mxu0 %v438
        %v500 = vpop.f32.mrf.mxu0
        %v501 = vadd.f32 0.0, %v500
        %v502 = vpop.f32.mrf.mxu0
        %v503 = vpop.f32.mrf.mxu0
        %v504 = vadd.f32 0.0, %v503
        %v505 = vpop.f32.mrf.mxu0
        %506 = vmatprep.mubr.bf16.mxu0 0
        %507 = vmatmul.mubr.bf16.gmra.mxu0 %v441
        %v508 = vpop.f32.mrf.mxu0
        %v509 = vadd.f32 0.0, %v508
        %v510 = vpop.f32.mrf.mxu0
        %v511 = vpop.f32.mrf.mxu0
        %v512 = vadd.f32 0.0, %v511
        %v513 = vpop.f32.mrf.mxu0
        %514 = vmatprep.mubr.bf16.mxu0 0
        %515 = vmatmul.mubr.bf16.gmra.mxu0 %v444
        %v516 = vpop.f32.mrf.mxu0
        %v517 = vadd.f32 0.0, %v516
        %v518 = vpop.f32.mrf.mxu0
        %v519 = vpop.f32.mrf.mxu0
        %v520 = vadd.f32 0.0, %v519
        %v521 = vpop.f32.mrf.mxu0
        %522 = vmatprep.mubr.bf16.mxu0 0
        %523 = vmatmul.mubr.bf16.gmra.mxu0 %v447
        %v524 = vpop.f32.mrf.mxu0
        %v525 = vadd.f32 0.0, %v524
        %v526 = vpop.f32.mrf.mxu0
        %v527 = vpop.f32.mrf.mxu0
        %v528 = vadd.f32 0.0, %v527
        %v529 = vpop.f32.mrf.mxu0
        %530 = vmatprep.mubr.bf16.mxu0 0
        %531 = vmatmul.mubr.bf16.gmra.mxu0 %v450
        %v532 = vpop.f32.mrf.mxu0
        %v533 = vadd.f32 0.0, %v532
        %v534 = vpop.f32.mrf.mxu0
        %v535 = vpop.f32.mrf.mxu0
        %v536 = vadd.f32 0.0, %v535
        %v537 = vpop.f32.mrf.mxu0
        %538 = vmatprep.mubr.bf16.mxu0 0
        %539 = vmatmul.mubr.bf16.gmra.mxu0 %v453
        %v540 = vpop.f32.mrf.mxu0
        %v541 = vadd.f32 0.0, %v540
        %v542 = vpop.f32.mrf.mxu0
        %v543 = vpop.f32.mrf.mxu0
        %v544 = vadd.f32 0.0, %v543
        %v545 = vpop.f32.mrf.mxu0
        %546 = vmatprep.mubr.bf16.mxu0 0
        %547 = vmatmul.mubr.bf16.gmra.mxu0 %v456
        %v548 = vpop.f32.mrf.mxu0
        %v549 = vadd.f32 0.0, %v548
        %v550 = vpop.f32.mrf.mxu0
        %v551 = vpop.f32.mrf.mxu0
        %v552 = vadd.f32 0.0, %v551
        %v553 = vpop.f32.mrf.mxu0
        %554 = vdwg.mxu0
        %v555 = vmul.f32 %v493, 14.285714
        %v556 = vmul.f32 %v496, 14.285714
        %v557 = vmul.f32 %v501, 14.285714
        %v558 = vmul.f32 %v504, 14.285714
        %v559 = vmul.f32 %v509, 14.285714
        %v560 = vmul.f32 %v512, 14.285714
        %v561 = vmul.f32 %v517, 14.285714
        %v562 = vmul.f32 %v520, 14.285714
        %v563 = vmul.f32 %v525, 14.285714
        %v564 = vmul.f32 %v528, 14.285714
        %v565 = vmul.f32 %v533, 14.285714
        %v566 = vmul.f32 %v536, 14.285714
        %v567 = vmul.f32 %v541, 14.285714
        %v568 = vmul.f32 %v544, 14.285714
        %v569 = vmul.f32 %v549, 14.285714
        %v570 = vmul.f32 %v552, 14.285714
        %v571 = vsub.f32 %v555, 14.285714
        %v572 = vsub.f32 %v556, 14.285714
        %v573 = vsub.f32 %v557, 14.285714
        %v574 = vsub.f32 %v558, 14.285714
        %v575 = vsub.f32 %v559, 14.285714
        %v576 = vsub.f32 %v560, 14.285714
        %v577 = vsub.f32 %v561, 14.285714
        %v578 = vsub.f32 %v562, 14.285714
        %v579 = vsub.f32 %v563, 14.285714
        %v580 = vsub.f32 %v564, 14.285714
        %v581 = vsub.f32 %v565, 14.285714
        %v582 = vsub.f32 %v566, 14.285714
        %v583 = vsub.f32 %v567, 14.285714
        %v584 = vsub.f32 %v568, 14.285714
        %v585 = vsub.f32 %v569, 14.285714
        %v586 = vsub.f32 %v570, 14.285714
        %v587 = vmul.f32 %v571, 1.442695
        %v588 = vpow.pop %v587
        %v589 = vmul.f32 %v572, 1.442695
        %v590 = vpow.pop %v589
        %v591 = vmul.f32 %v573, 1.442695
        %v592 = vpow.pop %v591
        %v593 = vmul.f32 %v574, 1.442695
        %v594 = vpow.pop %v593
        %v595 = vmul.f32 %v575, 1.442695
        %v596 = vpow.pop %v595
        %v597 = vmul.f32 %v576, 1.442695
        %v598 = vpow.pop %v597
        %v599 = vmul.f32 %v577, 1.442695
        %v600 = vpow.pop %v599
        %v601 = vmul.f32 %v578, 1.442695
        %v602 = vpow.pop %v601
        %v603 = vmul.f32 %v579, 1.442695
        %v604 = vpow.pop %v603
        %v605 = vmul.f32 %v580, 1.442695
        %v606 = vpow.pop %v605
        %v607 = vmul.f32 %v581, 1.442695
        %v608 = vpow.pop %v607
        %v609 = vmul.f32 %v582, 1.442695
        %v610 = vpow.pop %v609
        %v611 = vmul.f32 %v583, 1.442695
        %v612 = vpow.pop %v611
        %v613 = vmul.f32 %v584, 1.442695
        %v614 = vpow.pop %v613
        %v615 = vmul.f32 %v585, 1.442695
        %v616 = vpow.pop %v615
        %v617 = vmul.f32 %v586, 1.442695
        %v618 = vpow.pop %v617
        // Predicated region
        $region82: #{tpu_custom_call.1} parent=68 // pred_check
          %p619 = pneg %p324
        $region83: #{tpu_custom_call.1} parent=68 // pred_check_branch
          %621 = sbr.rel (%p619) target = $region85
        $region84: #{tpu_custom_call.1} parent=68 // pred_region
          %v622 = vld [vmem:[#allocation5] sm:$0xf]
          %v623 = vld [vmem:[#allocation5 + $0x4] sm:$0xf]
          %v624 = vld [vmem:[#allocation5 + $0x8] sm:$0xf]
          %v625 = vld [vmem:[#allocation5 + $0xc] sm:$0xf]
          %v626 = vld [vmem:[#allocation5 + $0x10] sm:$0xf]
          %v627 = vld [vmem:[#allocation5 + $0x14] sm:$0xf]
          %v628 = vld [vmem:[#allocation5 + $0x18] sm:$0xf]
          %v629 = vld [vmem:[#allocation5 + $0x1c] sm:$0xf]
          %v630 = vld [vmem:[#allocation5 + $0x20] sm:$0xf]
          %v631 = vld [vmem:[#allocation5 + $0x24] sm:$0xf]
          %v632 = vld [vmem:[#allocation5 + $0x28] sm:$0xf]
          %v633 = vld [vmem:[#allocation5 + $0x2c] sm:$0xf]
          %v634 = vld [vmem:[#allocation5 + $0x30] sm:$0xf]
          %v635 = vld [vmem:[#allocation5 + $0x34] sm:$0xf]
          %v636 = vld [vmem:[#allocation5 + $0x38] sm:$0xf]
          %v637 = vld [vmem:[#allocation5 + $0x3c] sm:$0xf]
          %v638 = vunpack.c.l.bf16 %v622
          %v639 = vunpack.c.l.bf16 %v623
          %v640 = vunpack.c.l.bf16 %v624
          %v641 = vunpack.c.l.bf16 %v625
          %v642 = vunpack.c.l.bf16 %v626
          %v643 = vunpack.c.l.bf16 %v627
          %v644 = vunpack.c.l.bf16 %v628
          %v645 = vunpack.c.l.bf16 %v629
          %v646 = vunpack.c.l.bf16 %v630
          %v647 = vunpack.c.l.bf16 %v631
          %v648 = vunpack.c.l.bf16 %v632
          %v649 = vunpack.c.l.bf16 %v633
          %v650 = vunpack.c.l.bf16 %v634
          %v651 = vunpack.c.l.bf16 %v635
          %v652 = vunpack.c.l.bf16 %v636
          %v653 = vunpack.c.l.bf16 %v637
          %s654 = smul.u32 %s24, 128
          %v655 = vlaneseq
          %v656 = vshrl.u32 %v655, 7
          %v657 = vadd.s32 %v656, 8
          %v658 = vadd.s32 %v656, 16
          %v659 = vadd.s32 %v656, 24
          %v660 = vadd.s32 %v656, 32
          %v661 = vadd.s32 %v656, 40
          %v662 = vadd.s32 %v656, 48
          %v663 = vadd.s32 %v656, 56
          %v664 = vadd.s32 %v656, 64
          %v665 = vadd.s32 %v656, 72
          %v666 = vadd.s32 %v656, 80
          %v667 = vadd.s32 %v656, 88
          %v668 = vadd.s32 %v656, 96
          %v669 = vadd.s32 %v656, 104
          %v670 = vadd.s32 %v656, 112
          %v671 = vadd.s32 %v656, 120
          %v672 = vstv %s654
          %v673 = vadd.s32 %v672, %v656
          %v674 = vadd.s32 %v672, %v657
          %v675 = vadd.s32 %v672, %v658
          %v676 = vadd.s32 %v672, %v659
          %v677 = vadd.s32 %v672, %v660
          %v678 = vadd.s32 %v672, %v661
          %v679 = vadd.s32 %v672, %v662
          %v680 = vadd.s32 %v672, %v663
          %v681 = vadd.s32 %v672, %v664
          %v682 = vadd.s32 %v672, %v665
          %v683 = vadd.s32 %v672, %v666
          %v684 = vadd.s32 %v672, %v667
          %v685 = vadd.s32 %v672, %v668
          %v686 = vadd.s32 %v672, %v669
          %v687 = vadd.s32 %v672, %v670
          %v688 = vadd.s32 %v672, %v671
          %s689 = smul.u32 %s25, 128
          %v690 = vlaneseq
          %v691 = vand.u32 %v690, 127
          %v692 = vstv %s689
          %v693 = vadd.s32 %v692, %v691
          %vm694 = vcmp.lt.s32.totalorder %v693, 8
          %v695 = vsel %vm694, 1, 0
          %v696 = vcvt.s32.f32 %v695
          %v697 = vsub.f32 1.0, %v638
          %v698 = vsub.f32 1.0, %v639
          %v699 = vsub.f32 1.0, %v640
          %v700 = vsub.f32 1.0, %v641
          %v701 = vsub.f32 1.0, %v642
          %v702 = vsub.f32 1.0, %v643
          %v703 = vsub.f32 1.0, %v644
          %v704 = vsub.f32 1.0, %v645
          %v705 = vsub.f32 1.0, %v646
          %v706 = vsub.f32 1.0, %v647
          %v707 = vsub.f32 1.0, %v648
          %v708 = vsub.f32 1.0, %v649
          %v709 = vsub.f32 1.0, %v650
          %v710 = vsub.f32 1.0, %v651
          %v711 = vsub.f32 1.0, %v652
          %v712 = vsub.f32 1.0, %v653
          %v713 = vmul.f32 %v696, %v697
          %v714 = vmul.f32 %v696, %v698
          %v715 = vmul.f32 %v696, %v699
          %v716 = vmul.f32 %v696, %v700
          %v717 = vmul.f32 %v696, %v701
          %v718 = vmul.f32 %v696, %v702
          %v719 = vmul.f32 %v696, %v703
          %v720 = vmul.f32 %v696, %v704
          %v721 = vmul.f32 %v696, %v705
          %v722 = vmul.f32 %v696, %v706
          %v723 = vmul.f32 %v696, %v707
          %v724 = vmul.f32 %v696, %v708
          %v725 = vmul.f32 %v696, %v709
          %v726 = vmul.f32 %v696, %v710
          %v727 = vmul.f32 %v696, %v711
          %v728 = vmul.f32 %v696, %v712
          %729 = vst [vmem:[#allocation2] sm:$0xff] %v638
          %730 = vst [vmem:[#allocation2 + $0x8] sm:$0xff] %v639
          %731 = vst [vmem:[#allocation2 + $0x10] sm:$0xff] %v640
          %732 = vst [vmem:[#allocation2 + $0x18] sm:$0xff] %v641
          %733 = vst [vmem:[#allocation2 + $0x20] sm:$0xff] %v642
          %734 = vst [vmem:[#allocation2 + $0x28] sm:$0xff] %v643
          %735 = vst [vmem:[#allocation2 + $0x30] sm:$0xff] %v644
          %736 = vst [vmem:[#allocation2 + $0x38] sm:$0xff] %v645
          %737 = vst [vmem:[#allocation2 + $0x40] sm:$0xff] %v646
          %738 = vst [vmem:[#allocation2 + $0x48] sm:$0xff] %v647
          %739 = vst [vmem:[#allocation2 + $0x50] sm:$0xff] %v648
          %740 = vst [vmem:[#allocation2 + $0x58] sm:$0xff] %v649
          %741 = vst [vmem:[#allocation2 + $0x60] sm:$0xff] %v650
          %742 = vst [vmem:[#allocation2 + $0x68] sm:$0xff] %v651
          %743 = vst [vmem:[#allocation2 + $0x70] sm:$0xff] %v652
          %744 = vst [vmem:[#allocation2 + $0x78] sm:$0xff] %v653
          %745 = vst [vmem:[#allocation3] sm:$0xff] %v713
          %746 = vst [vmem:[#allocation3 + $0x8] sm:$0xff] %v714
          %747 = vst [vmem:[#allocation3 + $0x10] sm:$0xff] %v715
          %748 = vst [vmem:[#allocation3 + $0x18] sm:$0xff] %v716
          %749 = vst [vmem:[#allocation3 + $0x20] sm:$0xff] %v717
          %750 = vst [vmem:[#allocation3 + $0x28] sm:$0xff] %v718
          %751 = vst [vmem:[#allocation3 + $0x30] sm:$0xff] %v719
          %752 = vst [vmem:[#allocation3 + $0x38] sm:$0xff] %v720
          %753 = vst [vmem:[#allocation3 + $0x40] sm:$0xff] %v721
          %754 = vst [vmem:[#allocation3 + $0x48] sm:$0xff] %v722
          %755 = vst [vmem:[#allocation3 + $0x50] sm:$0xff] %v723
          %756 = vst [vmem:[#allocation3 + $0x58] sm:$0xff] %v724
          %757 = vst [vmem:[#allocation3 + $0x60] sm:$0xff] %v725
          %758 = vst [vmem:[#allocation3 + $0x68] sm:$0xff] %v726
          %759 = vst [vmem:[#allocation3 + $0x70] sm:$0xff] %v727
          %760 = vst [vmem:[#allocation3 + $0x78] sm:$0xff] %v728
          %vm761 = vcmp.ne.s32.totalorder %v673, %v693
          %vm762 = vcmp.ne.s32.totalorder %v674, %v693
          %vm763 = vcmp.ne.s32.totalorder %v675, %v693
          %vm764 = vcmp.ne.s32.totalorder %v676, %v693
          %vm765 = vcmp.ne.s32.totalorder %v677, %v693
          %vm766 = vcmp.ne.s32.totalorder %v678, %v693
          %vm767 = vcmp.ne.s32.totalorder %v679, %v693
          %vm768 = vcmp.ne.s32.totalorder %v680, %v693
          %vm769 = vcmp.ne.s32.totalorder %v681, %v693
          %vm770 = vcmp.ne.s32.totalorder %v682, %v693
          %vm771 = vcmp.ne.s32.totalorder %v683, %v693
          %vm772 = vcmp.ne.s32.totalorder %v684, %v693
          %vm773 = vcmp.ne.s32.totalorder %v685, %v693
          %vm774 = vcmp.ne.s32.totalorder %v686, %v693
          %vm775 = vcmp.ne.s32.totalorder %v687, %v693
          %vm776 = vcmp.ne.s32.totalorder %v688, %v693
          %v777 = vsel %vm761, 1, 0
          %v778 = vsel %vm762, 1, 0
          %v779 = vsel %vm763, 1, 0
          %v780 = vsel %vm764, 1, 0
          %v781 = vsel %vm765, 1, 0
          %v782 = vsel %vm766, 1, 0
          %v783 = vsel %vm767, 1, 0
          %v784 = vsel %vm768, 1, 0
          %v785 = vsel %vm769, 1, 0
          %v786 = vsel %vm770, 1, 0
          %v787 = vsel %vm771, 1, 0
          %v788 = vsel %vm772, 1, 0
          %v789 = vsel %vm773, 1, 0
          %v790 = vsel %vm774, 1, 0
          %v791 = vsel %vm775, 1, 0
          %v792 = vsel %vm776, 1, 0
          %v793 = vcvt.s32.f32 %v777
          %v794 = vcvt.s32.f32 %v778
          %v795 = vcvt.s32.f32 %v779
          %v796 = vcvt.s32.f32 %v780
          %v797 = vcvt.s32.f32 %v781
          %v798 = vcvt.s32.f32 %v782
          %v799 = vcvt.s32.f32 %v783
          %v800 = vcvt.s32.f32 %v784
          %v801 = vcvt.s32.f32 %v785
          %v802 = vcvt.s32.f32 %v786
          %v803 = vcvt.s32.f32 %v787
          %v804 = vcvt.s32.f32 %v788
          %v805 = vcvt.s32.f32 %v789
          %v806 = vcvt.s32.f32 %v790
          %v807 = vcvt.s32.f32 %v791
          %v808 = vcvt.s32.f32 %v792
          %v809 = vmul.f32 %v638, %v793
          %v810 = vmul.f32 %v639, %v794
          %v811 = vmul.f32 %v640, %v795
          %v812 = vmul.f32 %v641, %v796
          %v813 = vmul.f32 %v642, %v797
          %v814 = vmul.f32 %v643, %v798
          %v815 = vmul.f32 %v644, %v799
          %v816 = vmul.f32 %v645, %v800
          %v817 = vmul.f32 %v646, %v801
          %v818 = vmul.f32 %v647, %v802
          %v819 = vmul.f32 %v648, %v803
          %v820 = vmul.f32 %v649, %v804
          %v821 = vmul.f32 %v650, %v805
          %v822 = vmul.f32 %v651, %v806
          %v823 = vmul.f32 %v652, %v807
          %v824 = vmul.f32 %v653, %v808
          %v825 = vmul.f32 %v713, %v793
          %v826 = vmul.f32 %v714, %v794
          %v827 = vmul.f32 %v715, %v795
          %v828 = vmul.f32 %v716, %v796
          %v829 = vmul.f32 %v717, %v797
          %v830 = vmul.f32 %v718, %v798
          %v831 = vmul.f32 %v719, %v799
          %v832 = vmul.f32 %v720, %v800
          %v833 = vmul.f32 %v721, %v801
          %v834 = vmul.f32 %v722, %v802
          %v835 = vmul.f32 %v723, %v803
          %v836 = vmul.f32 %v724, %v804
          %v837 = vmul.f32 %v725, %v805
          %v838 = vmul.f32 %v726, %v806
          %v839 = vmul.f32 %v727, %v807
          %v840 = vmul.f32 %v728, %v808
          %v841 = vmul.f32 %v588, %v825
          %v842 = vmul.f32 %v590, %v826
          %v843 = vmul.f32 %v592, %v827
          %v844 = vmul.f32 %v594, %v828
          %v845 = vmul.f32 %v596, %v829
          %v846 = vmul.f32 %v598, %v830
          %v847 = vmul.f32 %v600, %v831
          %v848 = vmul.f32 %v602, %v832
          %v849 = vmul.f32 %v604, %v833
          %v850 = vmul.f32 %v606, %v834
          %v851 = vmul.f32 %v608, %v835
          %v852 = vmul.f32 %v610, %v836
          %v853 = vmul.f32 %v612, %v837
          %v854 = vmul.f32 %v614, %v838
          %v855 = vmul.f32 %v616, %v839
          %v856 = vmul.f32 %v618, %v840
          %v857 = vmul.f32 %v571, %v809
          %v858 = vmul.f32 %v572, %v810
          %v859 = vmul.f32 %v573, %v811
          %v860 = vmul.f32 %v574, %v812
          %v861 = vmul.f32 %v575, %v813
          %v862 = vmul.f32 %v576, %v814
          %v863 = vmul.f32 %v577, %v815
          %v864 = vmul.f32 %v578, %v816
          %v865 = vmul.f32 %v579, %v817
          %v866 = vmul.f32 %v580, %v818
          %v867 = vmul.f32 %v581, %v819
          %v868 = vmul.f32 %v582, %v820
          %v869 = vmul.f32 %v583, %v821
          %v870 = vmul.f32 %v584, %v822
          %v871 = vmul.f32 %v585, %v823
          %v872 = vmul.f32 %v586, %v824
          %v873 = vld [vmem:[#allocation8] sm:$0xff]
          %v874 = vld [vmem:[#allocation8 + $0x8] sm:$0xff]
          %v875 = vld [vmem:[#allocation8 + $0x10] sm:$0xff]
          %v876 = vld [vmem:[#allocation8 + $0x18] sm:$0xff]
          %v877 = vld [vmem:[#allocation8 + $0x20] sm:$0xff]
          %v878 = vld [vmem:[#allocation8 + $0x28] sm:$0xff]
          %v879 = vld [vmem:[#allocation8 + $0x30] sm:$0xff]
          %v880 = vld [vmem:[#allocation8 + $0x38] sm:$0xff]
          %v881 = vld [vmem:[#allocation8 + $0x40] sm:$0xff]
          %v882 = vld [vmem:[#allocation8 + $0x48] sm:$0xff]
          %v883 = vld [vmem:[#allocation8 + $0x50] sm:$0xff]
          %v884 = vld [vmem:[#allocation8 + $0x58] sm:$0xff]
          %v885 = vld [vmem:[#allocation8 + $0x60] sm:$0xff]
          %v886 = vld [vmem:[#allocation8 + $0x68] sm:$0xff]
          %v887 = vld [vmem:[#allocation8 + $0x70] sm:$0xff]
          %v888 = vld [vmem:[#allocation8 + $0x78] sm:$0xff]
          %v889 = vadd.f32 %v873, %v841
          %v890 = vadd.f32 %v874, %v842
          %v891 = vadd.f32 %v875, %v843
          %v892 = vadd.f32 %v876, %v844
          %v893 = vadd.f32 %v877, %v845
          %v894 = vadd.f32 %v878, %v846
          %v895 = vadd.f32 %v879, %v847
          %v896 = vadd.f32 %v880, %v848
          %v897 = vadd.f32 %v881, %v849
          %v898 = vadd.f32 %v882, %v850
          %v899 = vadd.f32 %v883, %v851
          %v900 = vadd.f32 %v884, %v852
          %v901 = vadd.f32 %v885, %v853
          %v902 = vadd.f32 %v886, %v854
          %v903 = vadd.f32 %v887, %v855
          %v904 = vadd.f32 %v888, %v856
          %905 = vst [vmem:[#allocation8] sm:$0xff] %v889
          %906 = vst [vmem:[#allocation8 + $0x8] sm:$0xff] %v890
          %907 = vst [vmem:[#allocation8 + $0x10] sm:$0xff] %v891
          %908 = vst [vmem:[#allocation8 + $0x18] sm:$0xff] %v892
          %909 = vst [vmem:[#allocation8 + $0x20] sm:$0xff] %v893
          %910 = vst [vmem:[#allocation8 + $0x28] sm:$0xff] %v894
          %911 = vst [vmem:[#allocation8 + $0x30] sm:$0xff] %v895
          %912 = vst [vmem:[#allocation8 + $0x38] sm:$0xff] %v896
          %913 = vst [vmem:[#allocation8 + $0x40] sm:$0xff] %v897
          %914 = vst [vmem:[#allocation8 + $0x48] sm:$0xff] %v898
          %915 = vst [vmem:[#allocation8 + $0x50] sm:$0xff] %v899
          %916 = vst [vmem:[#allocation8 + $0x58] sm:$0xff] %v900
          %917 = vst [vmem:[#allocation8 + $0x60] sm:$0xff] %v901
          %918 = vst [vmem:[#allocation8 + $0x68] sm:$0xff] %v902
          %919 = vst [vmem:[#allocation8 + $0x70] sm:$0xff] %v903
          %920 = vst [vmem:[#allocation8 + $0x78] sm:$0xff] %v904
          %v921 = vld [vmem:[#allocation9] sm:$0xff]
          %v922 = vld [vmem:[#allocation9 + $0x8] sm:$0xff]
          %v923 = vld [vmem:[#allocation9 + $0x10] sm:$0xff]
          %v924 = vld [vmem:[#allocation9 + $0x18] sm:$0xff]
          %v925 = vld [vmem:[#allocation9 + $0x20] sm:$0xff]
          %v926 = vld [vmem:[#allocation9 + $0x28] sm:$0xff]
          %v927 = vld [vmem:[#allocation9 + $0x30] sm:$0xff]
          %v928 = vld [vmem:[#allocation9 + $0x38] sm:$0xff]
          %v929 = vld [vmem:[#allocation9 + $0x40] sm:$0xff]
          %v930 = vld [vmem:[#allocation9 + $0x48] sm:$0xff]
          %v931 = vld [vmem:[#allocation9 + $0x50] sm:$0xff]
          %v932 = vld [vmem:[#allocation9 + $0x58] sm:$0xff]
          %v933 = vld [vmem:[#allocation9 + $0x60] sm:$0xff]
          %v934 = vld [vmem:[#allocation9 + $0x68] sm:$0xff]
          %v935 = vld [vmem:[#allocation9 + $0x70] sm:$0xff]
          %v936 = vld [vmem:[#allocation9 + $0x78] sm:$0xff]
          %v937 = vadd.f32 %v921, %v857
          %v938 = vadd.f32 %v922, %v858
          %v939 = vadd.f32 %v923, %v859
          %v940 = vadd.f32 %v924, %v860
          %v941 = vadd.f32 %v925, %v861
          %v942 = vadd.f32 %v926, %v862
          %v943 = vadd.f32 %v927, %v863
          %v944 = vadd.f32 %v928, %v864
          %v945 = vadd.f32 %v929, %v865
          %v946 = vadd.f32 %v930, %v866
          %v947 = vadd.f32 %v931, %v867
          %v948 = vadd.f32 %v932, %v868
          %v949 = vadd.f32 %v933, %v869
          %v950 = vadd.f32 %v934, %v870
          %v951 = vadd.f32 %v935, %v871
          %v952 = vadd.f32 %v936, %v872
          %953 = vst [vmem:[#allocation9] sm:$0xff] %v937
          %954 = vst [vmem:[#allocation9 + $0x8] sm:$0xff] %v938
          %955 = vst [vmem:[#allocation9 + $0x10] sm:$0xff] %v939
          %956 = vst [vmem:[#allocation9 + $0x18] sm:$0xff] %v940
          %957 = vst [vmem:[#allocation9 + $0x20] sm:$0xff] %v941
          %958 = vst [vmem:[#allocation9 + $0x28] sm:$0xff] %v942
          %959 = vst [vmem:[#allocation9 + $0x30] sm:$0xff] %v943
          %960 = vst [vmem:[#allocation9 + $0x38] sm:$0xff] %v944
          %961 = vst [vmem:[#allocation9 + $0x40] sm:$0xff] %v945
          %962 = vst [vmem:[#allocation9 + $0x48] sm:$0xff] %v946
          %963 = vst [vmem:[#allocation9 + $0x50] sm:$0xff] %v947
          %964 = vst [vmem:[#allocation9 + $0x58] sm:$0xff] %v948
          %965 = vst [vmem:[#allocation9 + $0x60] sm:$0xff] %v949
          %966 = vst [vmem:[#allocation9 + $0x68] sm:$0xff] %v950
          %967 = vst [vmem:[#allocation9 + $0x70] sm:$0xff] %v951
          %968 = vst [vmem:[#allocation9 + $0x78] sm:$0xff] %v952
        $region85: #{tpu_custom_call.1} parent=68 // pred_fallthru
          _
        %p969 = scmp.ne.s32.totalorder %s26, 0
        // Predicated region
        $region86: #{tpu_custom_call.1} parent=68 // pred_check
          %p970 = pneg %p969
        $region87: #{tpu_custom_call.1} parent=68 // pred_check_branch
          %972 = sbr.rel (%p970) target = $region89
        $region88: #{tpu_custom_call.1} parent=68 // pred_region
          %v973 = vld [vmem:[#allocation2] sm:$0xff]
          %v974 = vld [vmem:[#allocation2 + $0x8] sm:$0xff]
          %v975 = vld [vmem:[#allocation2 + $0x10] sm:$0xff]
          %v976 = vld [vmem:[#allocation2 + $0x18] sm:$0xff]
          %v977 = vld [vmem:[#allocation2 + $0x20] sm:$0xff]
          %v978 = vld [vmem:[#allocation2 + $0x28] sm:$0xff]
          %v979 = vld [vmem:[#allocation2 + $0x30] sm:$0xff]
          %v980 = vld [vmem:[#allocation2 + $0x38] sm:$0xff]
          %v981 = vld [vmem:[#allocation2 + $0x40] sm:$0xff]
          %v982 = vld [vmem:[#allocation2 + $0x48] sm:$0xff]
          %v983 = vld [vmem:[#allocation2 + $0x50] sm:$0xff]
          %v984 = vld [vmem:[#allocation2 + $0x58] sm:$0xff]
          %v985 = vld [vmem:[#allocation2 + $0x60] sm:$0xff]
          %v986 = vld [vmem:[#allocation2 + $0x68] sm:$0xff]
          %v987 = vld [vmem:[#allocation2 + $0x70] sm:$0xff]
          %v988 = vld [vmem:[#allocation2 + $0x78] sm:$0xff]
          %v989 = vld [vmem:[#allocation3] sm:$0xff]
          %v990 = vld [vmem:[#allocation3 + $0x8] sm:$0xff]
          %v991 = vld [vmem:[#allocation3 + $0x10] sm:$0xff]
          %v992 = vld [vmem:[#allocation3 + $0x18] sm:$0xff]
          %v993 = vld [vmem:[#allocation3 + $0x20] sm:$0xff]
          %v994 = vld [vmem:[#allocation3 + $0x28] sm:$0xff]
          %v995 = vld [vmem:[#allocation3 + $0x30] sm:$0xff]
          %v996 = vld [vmem:[#allocation3 + $0x38] sm:$0xff]
          %v997 = vld [vmem:[#allocation3 + $0x40] sm:$0xff]
          %v998 = vld [vmem:[#allocation3 + $0x48] sm:$0xff]
          %v999 = vld [vmem:[#allocation3 + $0x50] sm:$0xff]
          %v1000 = vld [vmem:[#allocation3 + $0x58] sm:$0xff]
          %v1001 = vld [vmem:[#allocation3 + $0x60] sm:$0xff]
          %v1002 = vld [vmem:[#allocation3 + $0x68] sm:$0xff]
          %v1003 = vld [vmem:[#allocation3 + $0x70] sm:$0xff]
          %v1004 = vld [vmem:[#allocation3 + $0x78] sm:$0xff]
          %v1005 = vmul.f32 %v588, %v989
          %v1006 = vmul.f32 %v590, %v990
          %v1007 = vmul.f32 %v592, %v991
          %v1008 = vmul.f32 %v594, %v992
          %v1009 = vmul.f32 %v596, %v993
          %v1010 = vmul.f32 %v598, %v994
          %v1011 = vmul.f32 %v600, %v995
          %v1012 = vmul.f32 %v602, %v996
          %v1013 = vmul.f32 %v604, %v997
          %v1014 = vmul.f32 %v606, %v998
          %v1015 = vmul.f32 %v608, %v999
          %v1016 = vmul.f32 %v610, %v1000
          %v1017 = vmul.f32 %v612, %v1001
          %v1018 = vmul.f32 %v614, %v1002
          %v1019 = vmul.f32 %v616, %v1003
          %v1020 = vmul.f32 %v618, %v1004
          %v1021 = vmul.f32 %v571, %v973
          %v1022 = vmul.f32 %v572, %v974
          %v1023 = vmul.f32 %v573, %v975
          %v1024 = vmul.f32 %v574, %v976
          %v1025 = vmul.f32 %v575, %v977
          %v1026 = vmul.f32 %v576, %v978
          %v1027 = vmul.f32 %v577, %v979
          %v1028 = vmul.f32 %v578, %v980
          %v1029 = vmul.f32 %v579, %v981
          %v1030 = vmul.f32 %v580, %v982
          %v1031 = vmul.f32 %v581, %v983
          %v1032 = vmul.f32 %v582, %v984
          %v1033 = vmul.f32 %v583, %v985
          %v1034 = vmul.f32 %v584, %v986
          %v1035 = vmul.f32 %v585, %v987
          %v1036 = vmul.f32 %v586, %v988
          %v1037 = vld [vmem:[#allocation8] sm:$0xff]
          %v1038 = vld [vmem:[#allocation8 + $0x8] sm:$0xff]
          %v1039 = vld [vmem:[#allocation8 + $0x10] sm:$0xff]
          %v1040 = vld [vmem:[#allocation8 + $0x18] sm:$0xff]
          %v1041 = vld [vmem:[#allocation8 + $0x20] sm:$0xff]
          %v1042 = vld [vmem:[#allocation8 + $0x28] sm:$0xff]
          %v1043 = vld [vmem:[#allocation8 + $0x30] sm:$0xff]
          %v1044 = vld [vmem:[#allocation8 + $0x38] sm:$0xff]
          %v1045 = vld [vmem:[#allocation8 + $0x40] sm:$0xff]
          %v1046 = vld [vmem:[#allocation8 + $0x48] sm:$0xff]
          %v1047 = vld [vmem:[#allocation8 + $0x50] sm:$0xff]
          %v1048 = vld [vmem:[#allocation8 + $0x58] sm:$0xff]
          %v1049 = vld [vmem:[#allocation8 + $0x60] sm:$0xff]
          %v1050 = vld [vmem:[#allocation8 + $0x68] sm:$0xff]
          %v1051 = vld [vmem:[#allocation8 + $0x70] sm:$0xff]
          %v1052 = vld [vmem:[#allocation8 + $0x78] sm:$0xff]
          %v1053 = vadd.f32 %v1037, %v1005
          %v1054 = vadd.f32 %v1038, %v1006
          %v1055 = vadd.f32 %v1039, %v1007
          %v1056 = vadd.f32 %v1040, %v1008
          %v1057 = vadd.f32 %v1041, %v1009
          %v1058 = vadd.f32 %v1042, %v1010
          %v1059 = vadd.f32 %v1043, %v1011
          %v1060 = vadd.f32 %v1044, %v1012
          %v1061 = vadd.f32 %v1045, %v1013
          %v1062 = vadd.f32 %v1046, %v1014
          %v1063 = vadd.f32 %v1047, %v1015
          %v1064 = vadd.f32 %v1048, %v1016
          %v1065 = vadd.f32 %v1049, %v1017
          %v1066 = vadd.f32 %v1050, %v1018
          %v1067 = vadd.f32 %v1051, %v1019
          %v1068 = vadd.f32 %v1052, %v1020
          %1069 = vst [vmem:[#allocation8] sm:$0xff] %v1053
          %1070 = vst [vmem:[#allocation8 + $0x8] sm:$0xff] %v1054
          %1071 = vst [vmem:[#allocation8 + $0x10] sm:$0xff] %v1055
          %1072 = vst [vmem:[#allocation8 + $0x18] sm:$0xff] %v1056
          %1073 = vst [vmem:[#allocation8 + $0x20] sm:$0xff] %v1057
          %1074 = vst [vmem:[#allocation8 + $0x28] sm:$0xff] %v1058
          %1075 = vst [vmem:[#allocation8 + $0x30] sm:$0xff] %v1059
          %1076 = vst [vmem:[#allocation8 + $0x38] sm:$0xff] %v1060
          %1077 = vst [vmem:[#allocation8 + $0x40] sm:$0xff] %v1061
          %1078 = vst [vmem:[#allocation8 + $0x48] sm:$0xff] %v1062
          %1079 = vst [vmem:[#allocation8 + $0x50] sm:$0xff] %v1063
          %1080 = vst [vmem:[#allocation8 + $0x58] sm:$0xff] %v1064
          %1081 = vst [vmem:[#allocation8 + $0x60] sm:$0xff] %v1065
          %1082 = vst [vmem:[#allocation8 + $0x68] sm:$0xff] %v1066
          %1083 = vst [vmem:[#allocation8 + $0x70] sm:$0xff] %v1067
          %1084 = vst [vmem:[#allocation8 + $0x78] sm:$0xff] %v1068
          %v1085 = vld [vmem:[#allocation9] sm:$0xff]
          %v1086 = vld [vmem:[#allocation9 + $0x8] sm:$0xff]
          %v1087 = vld [vmem:[#allocation9 + $0x10] sm:$0xff]
          %v1088 = vld [vmem:[#allocation9 + $0x18] sm:$0xff]
          %v1089 = vld [vmem:[#allocation9 + $0x20] sm:$0xff]
          %v1090 = vld [vmem:[#allocation9 + $0x28] sm:$0xff]
          %v1091 = vld [vmem:[#allocation9 + $0x30] sm:$0xff]
          %v1092 = vld [vmem:[#allocation9 + $0x38] sm:$0xff]
          %v1093 = vld [vmem:[#allocation9 + $0x40] sm:$0xff]
          %v1094 = vld [vmem:[#allocation9 + $0x48] sm:$0xff]
          %v1095 = vld [vmem:[#allocation9 + $0x50] sm:$0xff]
          %v1096 = vld [vmem:[#allocation9 + $0x58] sm:$0xff]
          %v1097 = vld [vmem:[#allocation9 + $0x60] sm:$0xff]
          %v1098 = vld [vmem:[#allocation9 + $0x68] sm:$0xff]
          %v1099 = vld [vmem:[#allocation9 + $0x70] sm:$0xff]
          %v1100 = vld [vmem:[#allocation9 + $0x78] sm:$0xff]
          %v1101 = vadd.f32 %v1085, %v1021
          %v1102 = vadd.f32 %v1086, %v1022
          %v1103 = vadd.f32 %v1087, %v1023
          %v1104 = vadd.f32 %v1088, %v1024
          %v1105 = vadd.f32 %v1089, %v1025
          %v1106 = vadd.f32 %v1090, %v1026
          %v1107 = vadd.f32 %v1091, %v1027
          %v1108 = vadd.f32 %v1092, %v1028
          %v1109 = vadd.f32 %v1093, %v1029
          %v1110 = vadd.f32 %v1094, %v1030
          %v1111 = vadd.f32 %v1095, %v1031
          %v1112 = vadd.f32 %v1096, %v1032
          %v1113 = vadd.f32 %v1097, %v1033
          %v1114 = vadd.f32 %v1098, %v1034
          %v1115 = vadd.f32 %v1099, %v1035
          %v1116 = vadd.f32 %v1100, %v1036
          %1117 = vst [vmem:[#allocation9] sm:$0xff] %v1101
          %1118 = vst [vmem:[#allocation9 + $0x8] sm:$0xff] %v1102
          %1119 = vst [vmem:[#allocation9 + $0x10] sm:$0xff] %v1103
          %1120 = vst [vmem:[#allocation9 + $0x18] sm:$0xff] %v1104
          %1121 = vst [vmem:[#allocation9 + $0x20] sm:$0xff] %v1105
          %1122 = vst [vmem:[#allocation9 + $0x28] sm:$0xff] %v1106
          %1123 = vst [vmem:[#allocation9 + $0x30] sm:$0xff] %v1107
          %1124 = vst [vmem:[#allocation9 + $0x38] sm:$0xff] %v1108
          %1125 = vst [vmem:[#allocation9 + $0x40] sm:$0xff] %v1109
          %1126 = vst [vmem:[#allocation9 + $0x48] sm:$0xff] %v1110
          %1127 = vst [vmem:[#allocation9 + $0x50] sm:$0xff] %v1111
          %1128 = vst [vmem:[#allocation9 + $0x58] sm:$0xff] %v1112
          %1129 = vst [vmem:[#allocation9 + $0x60] sm:$0xff] %v1113
          %1130 = vst [vmem:[#allocation9 + $0x68] sm:$0xff] %v1114
          %1131 = vst [vmem:[#allocation9 + $0x70] sm:$0xff] %v1115
          %1132 = vst [vmem:[#allocation9 + $0x78] sm:$0xff] %v1116
        $region89: #{tpu_custom_call.1} parent=68 // pred_fallthru
          _
        // Predicated region
        $region90: #{tpu_custom_call.1} parent=68 // pred_check
          %p1133 = pneg %p138
        $region91: #{tpu_custom_call.1} parent=68 // pred_check_branch
          %1135 = sbr.rel (%p1133) target = $region93
        $region92: #{tpu_custom_call.1} parent=68 // pred_region
          %s1136 = smul.u32 16, %s24
          %s1138 = ssub.s32 2048, 2048
          %1139 = vsyncadd [#allocation7], %s1138
          %s1140 = smul.addr %s1136, 128
          %s1141 = scalar_lea.hbm %s3, %s1140
          %s1142 = sshll.u32 [#allocation8], 4
          %s1143 = int_to_ptr.vmem [resolvable:$true] %s1142
          %1148 = dma.vmem_to_hbm [thread:$0]  %s1143, 2048, %s1141, [#allocation7], 128, 128, 8
        $region93: #{tpu_custom_call.1} parent=68 // pred_fallthru
          _
        // Predicated region
        $region94: #{tpu_custom_call.1} parent=68 // pred_check
          %p1149 = pneg %p164
        $region95: #{tpu_custom_call.1} parent=68 // pred_check_branch
          %1151 = sbr.rel (%p1149) target = $region97
        $region96: #{tpu_custom_call.1} parent=68 // pred_region
          %s1152 = smul.u32 16, %s24
          %s1154 = ssub.s32 2048, 2048
          %1155 = vsyncadd [#allocation10], %s1154
          %s1156 = smul.addr %s1152, 128
          %s1157 = scalar_lea.hbm %s4, %s1156
          %s1158 = sshll.u32 [#allocation9], 4
          %s1159 = int_to_ptr.vmem [resolvable:$true] %s1158
          %1164 = dma.vmem_to_hbm [thread:$0]  %s1159, 2048, %s1157, [#allocation10], 128, 128, 8
        $region97: #{tpu_custom_call.1} parent=68 // pred_fallthru
          _
        // Predicated region
        $region98: #{tpu_custom_call.1} parent=68 // pred_check
          %p1165 = pneg %p138
        $region99: #{tpu_custom_call.1} parent=68 // pred_check_branch
          %1167 = sbr.rel (%p1165) target = $region101
        $region100: #{tpu_custom_call.1} parent=68 // pred_region
          %1168 = dma.done [#allocation7], 2048
        $region101: #{tpu_custom_call.1} parent=68 // pred_fallthru
          _
        // Predicated region
        $region102: #{tpu_custom_call.1} parent=68 // pred_check
          %p1169 = pneg %p164
        $region103: #{tpu_custom_call.1} parent=68 // pred_check_branch
          %1171 = sbr.rel (%p1169) target = $region105
        $region104: #{tpu_custom_call.1} parent=68 // pred_region
          %1172 = dma.done [#allocation10], 2048
        $region105: #{tpu_custom_call.1} parent=68 // pred_fallthru
          _
      $region69: #{tpu_custom_call.1} parent=5 // pred_fallthru
        _
      %p1173 = scmp.le.s32.totalorder 2, %s14
      // Predicated region
      $region106: #{tpu_custom_call.1} parent=5 // pred_check
        %p1174 = pneg %p1173
      $region107: #{tpu_custom_call.1} parent=5 // pred_check_branch
        %1176 = sbr.rel (%p1174) target = $region109
      $region108: #{tpu_custom_call.1} parent=5 // pred_region
        %s1177 = ssub.s32 %s14, 2
      $region109: #{tpu_custom_call.1} parent=5 // pred_fallthru
        _
    $region6: #{tpu_custom_call.1} parent=1 // loop_footer
      %s18 = sadd.s32 1, %s14
    $region7: #{tpu_custom_call.1} parent=1 // loop_footer_branch
      %13 = sbr.rel target = $region3
    $region8: #{tpu_custom_call.1} parent=1 // loop_exit
      _
    %1178 = vsyncpa [#allocation6], 1
    %s1179 = scalar_lea.sflag [#allocation6], 1
    %1180 = vsyncpa %s1179, 1
    %1181 = vsyncpa [#allocation7], 1
    %s1182 = scalar_lea.sflag [#allocation7], 1
    %1183 = vsyncpa %s1182, 1
    %1184 = vsyncpa [#allocation10], 1

</llo_original>
